<compile_context>
chip_gen: v7x
topology: tpu7x:2x2x1
jax: 0.10.0
libtpu: 0.0.40
codegen_flags: <defaults>
</compile_context>

<pallas_src>
import math
import numpy as np
import jax
import jax.numpy as jnp
from jax.experimental import pallas as pl
from jax.experimental.pallas import tpu as pltpu


# ---------------------------------------------------------------------------
# DCT filter construction (deterministic, mirrors get_dct_filter / build_filter)
# ---------------------------------------------------------------------------
def build_filter(pos, freq, POS):
    result = math.cos(math.pi * freq * (pos + 0.5) / POS) / math.sqrt(POS)
    if freq == 0:
        return result
    return result * math.sqrt(2)


def get_dct_filter(tile_size_x, tile_size_y, mapper_x, mapper_y, channel):
    assert len(mapper_x) == len(mapper_y)
    assert channel % len(mapper_x) == 0
    dct_filter = np.zeros((channel, tile_size_x, tile_size_y), dtype=np.float32)
    c_part = channel // len(mapper_x)
    for i, (u_x, v_y) in enumerate(zip(mapper_x, mapper_y)):
        for t_x in range(tile_size_x):
            for t_y in range(tile_size_y):
                dct_filter[i * c_part:(i + 1) * c_part, t_x, t_y] = (
                    build_filter(t_x, u_x, tile_size_x)
                    * build_filter(t_y, v_y, tile_size_y)
                )
    return jnp.asarray(dct_filter)


# ---------------------------------------------------------------------------
# Pallas kernel: elementwise multiply by the DCT filter + spatial reduction
# ---------------------------------------------------------------------------
def _dct_pool_kernel(x_ref, w_ref, o_ref):
    # x_ref: (TN, TC, HW)   w_ref: (TC, HW)   o_ref: (TN, TC)
    x = x_ref[...].astype(jnp.float32)
    w = w_ref[...].astype(jnp.float32)          # implicit broadcast over N tile
    o_ref[...] = jnp.sum(x * w, axis=-1).astype(o_ref.dtype)


def _round_up(v, m):
    return ((v + m - 1) // m) * m


def multi_spectral_dct_layer(x, weight, *, target_block_bytes=2 * 1024 * 1024):
    """x: (N, C, H, W), weight: (C, H, W) -> (N, C)."""
    assert x.ndim == 4, "x must been 4 dimensions, but got " + str(x.ndim)
    N, C, H, W = x.shape
    assert weight.shape == (C, H, W)
    HW = H * W
    itemsize = jnp.dtype(x.dtype).itemsize

    # Lane-dense output tile: channel tile is a multiple of 128.
    TC = 128
    C_pad = _round_up(C, TC)

    # N tile: multiple of 8, sized so one x buffer is ~target_block_bytes
    # (double-buffered by Pallas), capped by the (8-aligned) batch size.
    tn = max(8, (target_block_bytes // (TC * HW * itemsize)) // 8 * 8)
    TN = int(min(tn, _round_up(N, 8)))
    N_pad = _round_up(N, TN)

    x_flat = x.reshape(N, C, HW)                 # spatial axis last (lane-dense)
    w_flat = weight.reshape(C, HW)
    if N_pad != N or C_pad != C:
        x_flat = jnp.pad(x_flat, ((0, N_pad - N), (0, C_pad - C), (0, 0)))
    if C_pad != C:
        w_flat = jnp.pad(w_flat, ((0, C_pad - C), (0, 0)))

    # N-tile axis innermost: weight block index constant across consecutive
    # steps -> its DMA is skipped; x tiles stream and pipeline.
    grid = (C_pad // TC, N_pad // TN)

    cost = pl.CostEstimate(
        flops=2 * N * C * HW,
        transcendentals=0,
        bytes_accessed=(N_pad * C_pad * HW + C_pad * HW + N_pad * C_pad) * itemsize,
    )

    out = pl.pallas_call(
        _dct_pool_kernel,
        out_shape=jax.ShapeDtypeStruct((N_pad, C_pad), x.dtype),
        grid_spec=pltpu.PrefetchScalarGridSpec(
            num_scalar_prefetch=0,
            grid=grid,
            in_specs=[
                pl.BlockSpec((TN, TC, HW), lambda c, n: (n, c, 0)),
                pl.BlockSpec((TC, HW), lambda c, n: (c, 0)),
            ],
            out_specs=pl.BlockSpec((TN, TC), lambda c, n: (n, c)),
        ),
        compiler_params=pltpu.CompilerParams(
            dimension_semantics=("parallel", "parallel"),
        ),
        cost_estimate=cost,
    )(x_flat, w_flat)

    return out[:N, :C]


# ---------------------------------------------------------------------------
# Main: deterministic example, compare vs pure-JAX reference
# ---------------------------------------------------------------------------
if __name__ == "__main__":
    N, C, H, W = 2, 4, 16, 16
    # num_freq = 2, channel % num_freq == 0
    mapper_x = [0, 1]
    mapper_y = [0, 2]

    weight = get_dct_filter(H, W, mapper_x, mapper_y, C)   # (C, H, W)

    key = jax.random.PRNGKey(0)
    x = jax.random.normal(key, (N, C, H, W), dtype=jnp.float32)

    out = multi_spectral_dct_layer(x, weight)
    out = jax.block_until_ready(out)

    # Pure-JAX reference (matches torch.sum(x * weight, dim=[2,3]))
    ref = jnp.sum(x * weight[None], axis=(2, 3))
    assert out.shape == (N, C)
    np.testing.assert_allclose(np.asarray(out), np.asarray(ref), rtol=1e-5, atol=1e-5)

    print("KERNEL_OK")
</pallas_src>

<mosaic_0001>
module attributes {stable_mosaic.version = 11 : i64} {
  func.func @_dct_pool_kernel(%arg0: i32, %arg1: i32, %arg2: memref<8x128x256xf32, #tpu.memory_space<vmem>>, %arg3: memref<128x256xf32, #tpu.memory_space<vmem>>, %arg4: memref<8x128xf32, #tpu.memory_space<vmem>>) attributes {dimension_semantics = [#tpu.dimension_semantics<parallel>, #tpu.dimension_semantics<parallel>], iteration_bounds = array<i64: 1, 1>, scalar_prefetch = 0 : i64, scratch_operands = 0 : i64, tpu.core_type = #tpu.core_type<tc>, window_params = [{transform_indices = @transform_0, window_bounds = array<i64: 8, 128, 256>}, {transform_indices = @transform_1, window_bounds = array<i64: 128, 256>}, {transform_indices = @transform_2, window_bounds = array<i64: 8, 128>}]} {
    %c0 = arith.constant 0 : index
    %c0_0 = arith.constant 0 : index
    %c0_1 = arith.constant 0 : index
    %0 = vector.load %arg2[%c0, %c0_0, %c0_1] : memref<8x128x256xf32, #tpu.memory_space<vmem>>, vector<8x128x256xf32>
    %c0_2 = arith.constant 0 : index
    %c0_3 = arith.constant 0 : index
    %1 = vector.load %arg3[%c0_2, %c0_3] : memref<128x256xf32, #tpu.memory_space<vmem>>, vector<128x256xf32>
    %2 = vector.shape_cast %1 : vector<128x256xf32> to vector<1x128x256xf32>
    %3 = vector.broadcast %2 : vector<1x128x256xf32> to vector<8x128x256xf32>
    %4 = arith.mulf %0, %3 : vector<8x128x256xf32>
    %cst = arith.constant dense<0.000000e+00> : vector<8x128xf32>
    %5 = vector.multi_reduction <add>, %4, %cst [2] : vector<8x128x256xf32> to vector<8x128xf32>
    %c0_4 = arith.constant 0 : index
    %c0_5 = arith.constant 0 : index
    %6 = vector.load %arg4[%c0_4, %c0_5] : memref<8x128xf32, #tpu.memory_space<vmem>>, vector<8x128xf32>
    tpu.vector_store %arg4[%c0_4, %c0_5], %5 {strides = array<i32>} : memref<8x128xf32, #tpu.memory_space<vmem>>, vector<8x128xf32>,
    return
  }
  func.func @transform_0(%arg0: i32, %arg1: i32) -> (i32, i32, i32) {
    %c0_i32 = arith.constant 0 : i32
    %c0_i32_0 = arith.constant 0 : i32
    return %arg1, %arg0, %c0_i32 : i32, i32, i32
  }
  func.func @transform_1(%arg0: i32, %arg1: i32) -> (i32, i32) {
    %c0_i32 = arith.constant 0 : i32
    %c0_i32_0 = arith.constant 0 : i32
    return %arg0, %c0_i32 : i32, i32
  }
  func.func @transform_2(%arg0: i32, %arg1: i32) -> (i32, i32) {
    %c0_i32 = arith.constant 0 : i32
    return %arg1, %arg0 : i32, i32
  }
}

</mosaic_0001>

<llo_original>
// kernel: tpu_custom_call.1
$region0: #{tpu_custom_call.1}
  #allocation0 [shape = 'u32[]', space=smem, size = 0x4, offset = 0x4, fixed_abs, tag = 'smem constant byte address 0x4 - core index']
  #allocation1 [shape = 'u32[144,128]{1,0:T(1,128)}', space=vmem, size = 0x12000, scoped, tag = 'internal scratch']
  %s0 = inlined_call_operand.hbm [shape: f32[8,128,256], index: 0, kind: input, shape index: {}]
  %s1 = inlined_call_operand.hbm [shape: f32[128,256], index: 1, kind: input, shape index: {}]
  %s2 = inlined_call_operand.hbm [shape: f32[8,128], index: 2, kind: output, shape index: {}]
  %s3 = sld [smem:[#allocation0]]
  $region26: #{tpu_custom_call.1} parent=0
    _
  %s5 = ssub.s32 1, %s3
  %s6 = scalar_select 0, %s5, %s3
  $region1: #{tpu_custom_call.1} parent=0
    #allocation2 [shape = 'u8[1048576]{0}', space=vmem, size = 0x100000, scoped, tag = 'input window, operand 0, single buffered']
    #allocation3 [shape = 's32[1]{0}', space=sflag, size = 0x4, scoped, tag = 'scoped memory for tpu_custom_call.1']
    #allocation4 [shape = 's32[1]{0}', space=sflag, size = 0x4, scoped, tag = 'scoped memory for tpu_custom_call.1']
    #allocation5 [shape = 'u8[131072]{0}', space=vmem, size = 0x20000, scoped, tag = 'input window, operand 1, single buffered']
    #allocation6 [shape = 's32[1]{0}', space=sflag, size = 0x4, scoped, tag = 'scoped memory for tpu_custom_call.1']
    #allocation7 [shape = 'u8[4096]{0}', space=vmem, size = 0x1000, scoped, tag = 'output window, operand 0, single buffered']
    %7 = vsyncpa [#allocation3], 0
    %8 = vsyncpa [#allocation6], 0
    %9 = vsyncpa [#allocation4], 0
    // Predicated region
    $region2: #{tpu_custom_call.1} parent=1 // pred_check
      _
    $region3: #{tpu_custom_call.1} parent=1 // pred_check_branch
      %11 = sbr.rel (0) target = $region5
    $region4: #{tpu_custom_call.1} parent=1 // pred_region
      %s13 = ssub.s32 32768, 32768
      %14 = vsyncadd [#allocation3], %s13
      %s15 = sshll.u32 [#allocation2], 4
      %s16 = int_to_ptr.vmem [resolvable:$true] %s15
      %21 = dma.hbm_to_vmem [thread:$0]  %s0, 32768, %s16, [#allocation3], 256, 256, 16
    $region5: #{tpu_custom_call.1} parent=1 // pred_fallthru
      _
    // Predicated region
    $region6: #{tpu_custom_call.1} parent=1 // pred_check
      _
    $region7: #{tpu_custom_call.1} parent=1 // pred_check_branch
      %23 = sbr.rel (0) target = $region9
    $region8: #{tpu_custom_call.1} parent=1 // pred_region
      %s25 = ssub.s32 4096, 4096
      %26 = vsyncadd [#allocation6], %s25
      %s27 = sshll.u32 [#allocation5], 4
      %s28 = int_to_ptr.vmem [resolvable:$true] %s27
      %33 = dma.hbm_to_vmem [thread:$0]  %s1, 4096, %s28, [#allocation6], 256, 256, 16
    $region9: #{tpu_custom_call.1} parent=1 // pred_fallthru
      _
    // Predicated region
    $region10: #{tpu_custom_call.1} parent=1 // pred_check
      _
    $region11: #{tpu_custom_call.1} parent=1 // pred_check_branch
      %35 = sbr.rel (0) target = $region13
    $region12: #{tpu_custom_call.1} parent=1 // pred_region
      %36 = dma.done [#allocation3], 32768
    $region13: #{tpu_custom_call.1} parent=1 // pred_fallthru
      _
    // Predicated region
    $region14: #{tpu_custom_call.1} parent=1 // pred_check
      _
    $region15: #{tpu_custom_call.1} parent=1 // pred_check_branch
      %38 = sbr.rel (0) target = $region17
    $region16: #{tpu_custom_call.1} parent=1 // pred_region
      %39 = dma.done [#allocation6], 4096
    $region17: #{tpu_custom_call.1} parent=1 // pred_fallthru
      _
    %v40 = vld [vmem:[#allocation2] sm:$0xff]
    %v41 = vld [vmem:[#allocation2 + $0x8] sm:$0xff]
    %v42 = vld [vmem:[#allocation2 + $0x10] sm:$0xff]
    %v43 = vld [vmem:[#allocation2 + $0x18] sm:$0xff]
    %v44 = vld [vmem:[#allocation2 + $0x20] sm:$0xff]
    %v45 = vld [vmem:[#allocation2 + $0x28] sm:$0xff]
    %v46 = vld [vmem:[#allocation2 + $0x30] sm:$0xff]
    %v47 = vld [vmem:[#allocation2 + $0x38] sm:$0xff]
    %v48 = vld [vmem:[#allocation2 + $0x40] sm:$0xff]
    %v49 = vld [vmem:[#allocation2 + $0x48] sm:$0xff]
    %v50 = vld [vmem:[#allocation2 + $0x50] sm:$0xff]
    %v51 = vld [vmem:[#allocation2 + $0x58] sm:$0xff]
    %v52 = vld [vmem:[#allocation2 + $0x60] sm:$0xff]
    %v53 = vld [vmem:[#allocation2 + $0x68] sm:$0xff]
    %v54 = vld [vmem:[#allocation2 + $0x70] sm:$0xff]
    %v55 = vld [vmem:[#allocation2 + $0x78] sm:$0xff]
    %v56 = vld [vmem:[#allocation2 + $0x80] sm:$0xff]
    %v57 = vld [vmem:[#allocation2 + $0x88] sm:$0xff]
    %v58 = vld [vmem:[#allocation2 + $0x90] sm:$0xff]
    %v59 = vld [vmem:[#allocation2 + $0x98] sm:$0xff]
    %v60 = vld [vmem:[#allocation2 + $0xa0] sm:$0xff]
    %v61 = vld [vmem:[#allocation2 + $0xa8] sm:$0xff]
    %v62 = vld [vmem:[#allocation2 + $0xb0] sm:$0xff]
    %v63 = vld [vmem:[#allocation2 + $0xb8] sm:$0xff]
    %v64 = vld [vmem:[#allocation2 + $0xc0] sm:$0xff]
    %v65 = vld [vmem:[#allocation2 + $0xc8] sm:$0xff]
    %v66 = vld [vmem:[#allocation2 + $0xd0] sm:$0xff]
    %v67 = vld [vmem:[#allocation2 + $0xd8] sm:$0xff]
    %v68 = vld [vmem:[#allocation2 + $0xe0] sm:$0xff]
    %v69 = vld [vmem:[#allocation2 + $0xe8] sm:$0xff]
    %v70 = vld [vmem:[#allocation2 + $0xf0] sm:$0xff]
    %v71 = vld [vmem:[#allocation2 + $0xf8] sm:$0xff]
    %v72 = vld [vmem:[#allocation2 + $0x100] sm:$0xff]
    %v73 = vld [vmem:[#allocation2 + $0x108] sm:$0xff]
    %v74 = vld [vmem:[#allocation2 + $0x110] sm:$0xff]
    %v75 = vld [vmem:[#allocation2 + $0x118] sm:$0xff]
    %v76 = vld [vmem:[#allocation2 + $0x120] sm:$0xff]
    %v77 = vld [vmem:[#allocation2 + $0x128] sm:$0xff]
    %v78 = vld [vmem:[#allocation2 + $0x130] sm:$0xff]
    %v79 = vld [vmem:[#allocation2 + $0x138] sm:$0xff]
    %v80 = vld [vmem:[#allocation2 + $0x140] sm:$0xff]
    %v81 = vld [vmem:[#allocation2 + $0x148] sm:$0xff]
    %v82 = vld [vmem:[#allocation2 + $0x150] sm:$0xff]
    %v83 = vld [vmem:[#allocation2 + $0x158] sm:$0xff]
    %v84 = vld [vmem:[#allocation2 + $0x160] sm:$0xff]
    %v85 = vld [vmem:[#allocation2 + $0x168] sm:$0xff]
    %v86 = vld [vmem:[#allocation2 + $0x170] sm:$0xff]
    %v87 = vld [vmem:[#allocation2 + $0x178] sm:$0xff]
    %v88 = vld [vmem:[#allocation2 + $0x180] sm:$0xff]
    %v89 = vld [vmem:[#allocation2 + $0x188] sm:$0xff]
    %v90 = vld [vmem:[#allocation2 + $0x190] sm:$0xff]
    %v91 = vld [vmem:[#allocation2 + $0x198] sm:$0xff]
    %v92 = vld [vmem:[#allocation2 + $0x1a0] sm:$0xff]
    %v93 = vld [vmem:[#allocation2 + $0x1a8] sm:$0xff]
    %v94 = vld [vmem:[#allocation2 + $0x1b0] sm:$0xff]
    %v95 = vld [vmem:[#allocation2 + $0x1b8] sm:$0xff]
    %v96 = vld [vmem:[#allocation2 + $0x1c0] sm:$0xff]
    %v97 = vld [vmem:[#allocation2 + $0x1c8] sm:$0xff]
    %v98 = vld [vmem:[#allocation2 + $0x1d0] sm:$0xff]
    %v99 = vld [vmem:[#allocation2 + $0x1d8] sm:$0xff]
    %v100 = vld [vmem:[#allocation2 + $0x1e0] sm:$0xff]
    %v101 = vld [vmem:[#allocation2 + $0x1e8] sm:$0xff]
    %v102 = vld [vmem:[#allocation2 + $0x1f0] sm:$0xff]
    %v103 = vld [vmem:[#allocation2 + $0x1f8] sm:$0xff]
    %v104 = vld [vmem:[#allocation2 + $0x200] sm:$0xff]
    %v105 = vld [vmem:[#allocation2 + $0x208] sm:$0xff]
    %v106 = vld [vmem:[#allocation2 + $0x210] sm:$0xff]
    %v107 = vld [vmem:[#allocation2 + $0x218] sm:$0xff]
    %v108 = vld [vmem:[#allocation2 + $0x220] sm:$0xff]
    %v109 = vld [vmem:[#allocation2 + $0x228] sm:$0xff]
    %v110 = vld [vmem:[#allocation2 + $0x230] sm:$0xff]
    %v111 = vld [vmem:[#allocation2 + $0x238] sm:$0xff]
    %v112 = vld [vmem:[#allocation2 + $0x240] sm:$0xff]
    %v113 = vld [vmem:[#allocation2 + $0x248] sm:$0xff]
    %v114 = vld [vmem:[#allocation2 + $0x250] sm:$0xff]
    %v115 = vld [vmem:[#allocation2 + $0x258] sm:$0xff]
    %v116 = vld [vmem:[#allocation2 + $0x260] sm:$0xff]
    %v117 = vld [vmem:[#allocation2 + $0x268] sm:$0xff]
    %v118 = vld [vmem:[#allocation2 + $0x270] sm:$0xff]
    %v119 = vld [vmem:[#allocation2 + $0x278] sm:$0xff]
    %v120 = vld [vmem:[#allocation2 + $0x280] sm:$0xff]
    %v121 = vld [vmem:[#allocation2 + $0x288] sm:$0xff]
    %v122 = vld [vmem:[#allocation2 + $0x290] sm:$0xff]
    %v123 = vld [vmem:[#allocation2 + $0x298] sm:$0xff]
    %v124 = vld [vmem:[#allocation2 + $0x2a0] sm:$0xff]
    %v125 = vld [vmem:[#allocation2 + $0x2a8] sm:$0xff]
    %v126 = vld [vmem:[#allocation2 + $0x2b0] sm:$0xff]
    %v127 = vld [vmem:[#allocation2 + $0x2b8] sm:$0xff]
    %v128 = vld [vmem:[#allocation2 + $0x2c0] sm:$0xff]
    %v129 = vld [vmem:[#allocation2 + $0x2c8] sm:$0xff]
    %v130 = vld [vmem:[#allocation2 + $0x2d0] sm:$0xff]
    %v131 = vld [vmem:[#allocation2 + $0x2d8] sm:$0xff]
    %v132 = vld [vmem:[#allocation2 + $0x2e0] sm:$0xff]
    %v133 = vld [vmem:[#allocation2 + $0x2e8] sm:$0xff]
    %v134 = vld [vmem:[#allocation2 + $0x2f0] sm:$0xff]
    %v135 = vld [vmem:[#allocation2 + $0x2f8] sm:$0xff]
    %v136 = vld [vmem:[#allocation2 + $0x300] sm:$0xff]
    %v137 = vld [vmem:[#allocation2 + $0x308] sm:$0xff]
    %v138 = vld [vmem:[#allocation2 + $0x310] sm:$0xff]
    %v139 = vld [vmem:[#allocation2 + $0x318] sm:$0xff]
    %v140 = vld [vmem:[#allocation2 + $0x320] sm:$0xff]
    %v141 = vld [vmem:[#allocation2 + $0x328] sm:$0xff]
    %v142 = vld [vmem:[#allocation2 + $0x330] sm:$0xff]
    %v143 = vld [vmem:[#allocation2 + $0x338] sm:$0xff]
    %v144 = vld [vmem:[#allocation2 + $0x340] sm:$0xff]
    %v145 = vld [vmem:[#allocation2 + $0x348] sm:$0xff]
    %v146 = vld [vmem:[#allocation2 + $0x350] sm:$0xff]
    %v147 = vld [vmem:[#allocation2 + $0x358] sm:$0xff]
    %v148 = vld [vmem:[#allocation2 + $0x360] sm:$0xff]
    %v149 = vld [vmem:[#allocation2 + $0x368] sm:$0xff]
    %v150 = vld [vmem:[#allocation2 + $0x370] sm:$0xff]
    %v151 = vld [vmem:[#allocation2 + $0x378] sm:$0xff]
    %v152 = vld [vmem:[#allocation2 + $0x380] sm:$0xff]
    %v153 = vld [vmem:[#allocation2 + $0x388] sm:$0xff]
    %v154 = vld [vmem:[#allocation2 + $0x390] sm:$0xff]
    %v155 = vld [vmem:[#allocation2 + $0x398] sm:$0xff]
    %v156 = vld [vmem:[#allocation2 + $0x3a0] sm:$0xff]
    %v157 = vld [vmem:[#allocation2 + $0x3a8] sm:$0xff]
    %v158 = vld [vmem:[#allocation2 + $0x3b0] sm:$0xff]
    %v159 = vld [vmem:[#allocation2 + $0x3b8] sm:$0xff]
    %v160 = vld [vmem:[#allocation2 + $0x3c0] sm:$0xff]
    %v161 = vld [vmem:[#allocation2 + $0x3c8] sm:$0xff]
    %v162 = vld [vmem:[#allocation2 + $0x3d0] sm:$0xff]
    %v163 = vld [vmem:[#allocation2 + $0x3d8] sm:$0xff]
    %v164 = vld [vmem:[#allocation2 + $0x3e0] sm:$0xff]
    %v165 = vld [vmem:[#allocation2 + $0x3e8] sm:$0xff]
    %v166 = vld [vmem:[#allocation2 + $0x3f0] sm:$0xff]
    %v167 = vld [vmem:[#allocation2 + $0x3f8] sm:$0xff]
    %v168 = vld [vmem:[#allocation2 + $0x400] sm:$0xff]
    %v169 = vld [vmem:[#allocation2 + $0x408] sm:$0xff]
    %v170 = vld [vmem:[#allocation2 + $0x410] sm:$0xff]
    %v171 = vld [vmem:[#allocation2 + $0x418] sm:$0xff]
    %v172 = vld [vmem:[#allocation2 + $0x420] sm:$0xff]
    %v173 = vld [vmem:[#allocation2 + $0x428] sm:$0xff]
    %v174 = vld [vmem:[#allocation2 + $0x430] sm:$0xff]
    %v175 = vld [vmem:[#allocation2 + $0x438] sm:$0xff]
    %v176 = vld [vmem:[#allocation2 + $0x440] sm:$0xff]
    %v177 = vld [vmem:[#allocation2 + $0x448] sm:$0xff]
    %v178 = vld [vmem:[#allocation2 + $0x450] sm:$0xff]
    %v179 = vld [vmem:[#allocation2 + $0x458] sm:$0xff]
    %v180 = vld [vmem:[#allocation2 + $0x460] sm:$0xff]
    %v181 = vld [vmem:[#allocation2 + $0x468] sm:$0xff]
    %v182 = vld [vmem:[#allocation2 + $0x470] sm:$0xff]
    %v183 = vld [vmem:[#allocation2 + $0x478] sm:$0xff]
    %v184 = vld [vmem:[#allocation2 + $0x480] sm:$0xff]
    %v185 = vld [vmem:[#allocation2 + $0x488] sm:$0xff]
    %v186 = vld [vmem:[#allocation2 + $0x490] sm:$0xff]
    %v187 = vld [vmem:[#allocation2 + $0x498] sm:$0xff]
    %v188 = vld [vmem:[#allocation2 + $0x4a0] sm:$0xff]
    %v189 = vld [vmem:[#allocation2 + $0x4a8] sm:$0xff]
    %v190 = vld [vmem:[#allocation2 + $0x4b0] sm:$0xff]
    %v191 = vld [vmem:[#allocation2 + $0x4b8] sm:$0xff]
    %v192 = vld [vmem:[#allocation2 + $0x4c0] sm:$0xff]
    %v193 = vld [vmem:[#allocation2 + $0x4c8] sm:$0xff]
    %v194 = vld [vmem:[#allocation2 + $0x4d0] sm:$0xff]
    %v195 = vld [vmem:[#allocation2 + $0x4d8] sm:$0xff]
    %v196 = vld [vmem:[#allocation2 + $0x4e0] sm:$0xff]
    %v197 = vld [vmem:[#allocation2 + $0x4e8] sm:$0xff]
    %v198 = vld [vmem:[#allocation2 + $0x4f0] sm:$0xff]
    %v199 = vld [vmem:[#allocation2 + $0x4f8] sm:$0xff]
    %v200 = vld [vmem:[#allocation2 + $0x500] sm:$0xff]
    %v201 = vld [vmem:[#allocation2 + $0x508] sm:$0xff]
    %v202 = vld [vmem:[#allocation2 + $0x510] sm:$0xff]
    %v203 = vld [vmem:[#allocation2 + $0x518] sm:$0xff]
    %v204 = vld [vmem:[#allocation2 + $0x520] sm:$0xff]
    %v205 = vld [vmem:[#allocation2 + $0x528] sm:$0xff]
    %v206 = vld [vmem:[#allocation2 + $0x530] sm:$0xff]
    %v207 = vld [vmem:[#allocation2 + $0x538] sm:$0xff]
    %v208 = vld [vmem:[#allocation2 + $0x540] sm:$0xff]
    %v209 = vld [vmem:[#allocation2 + $0x548] sm:$0xff]
    %v210 = vld [vmem:[#allocation2 + $0x550] sm:$0xff]
    %v211 = vld [vmem:[#allocation2 + $0x558] sm:$0xff]
    %v212 = vld [vmem:[#allocation2 + $0x560] sm:$0xff]
    %v213 = vld [vmem:[#allocation2 + $0x568] sm:$0xff]
    %v214 = vld [vmem:[#allocation2 + $0x570] sm:$0xff]
    %v215 = vld [vmem:[#allocation2 + $0x578] sm:$0xff]
    %v216 = vld [vmem:[#allocation2 + $0x580] sm:$0xff]
    %v217 = vld [vmem:[#allocation2 + $0x588] sm:$0xff]
    %v218 = vld [vmem:[#allocation2 + $0x590] sm:$0xff]
    %v219 = vld [vmem:[#allocation2 + $0x598] sm:$0xff]
    %v220 = vld [vmem:[#allocation2 + $0x5a0] sm:$0xff]
    %v221 = vld [vmem:[#allocation2 + $0x5a8] sm:$0xff]
    %v222 = vld [vmem:[#allocation2 + $0x5b0] sm:$0xff]
    %v223 = vld [vmem:[#allocation2 + $0x5b8] sm:$0xff]
    %v224 = vld [vmem:[#allocation2 + $0x5c0] sm:$0xff]
    %v225 = vld [vmem:[#allocation2 + $0x5c8] sm:$0xff]
    %v226 = vld [vmem:[#allocation2 + $0x5d0] sm:$0xff]
    %v227 = vld [vmem:[#allocation2 + $0x5d8] sm:$0xff]
    %v228 = vld [vmem:[#allocation2 + $0x5e0] sm:$0xff]
    %v229 = vld [vmem:[#allocation2 + $0x5e8] sm:$0xff]
    %v230 = vld [vmem:[#allocation2 + $0x5f0] sm:$0xff]
    %v231 = vld [vmem:[#allocation2 + $0x5f8] sm:$0xff]
    %v232 = vld [vmem:[#allocation2 + $0x600] sm:$0xff]
    %v233 = vld [vmem:[#allocation2 + $0x608] sm:$0xff]
    %v234 = vld [vmem:[#allocation2 + $0x610] sm:$0xff]
    %v235 = vld [vmem:[#allocation2 + $0x618] sm:$0xff]
    %v236 = vld [vmem:[#allocation2 + $0x620] sm:$0xff]
    %v237 = vld [vmem:[#allocation2 + $0x628] sm:$0xff]
    %v238 = vld [vmem:[#allocation2 + $0x630] sm:$0xff]
    %v239 = vld [vmem:[#allocation2 + $0x638] sm:$0xff]
    %v240 = vld [vmem:[#allocation2 + $0x640] sm:$0xff]
    %v241 = vld [vmem:[#allocation2 + $0x648] sm:$0xff]
    %v242 = vld [vmem:[#allocation2 + $0x650] sm:$0xff]
    %v243 = vld [vmem:[#allocation2 + $0x658] sm:$0xff]
    %v244 = vld [vmem:[#allocation2 + $0x660] sm:$0xff]
    %v245 = vld [vmem:[#allocation2 + $0x668] sm:$0xff]
    %v246 = vld [vmem:[#allocation2 + $0x670] sm:$0xff]
    %v247 = vld [vmem:[#allocation2 + $0x678] sm:$0xff]
    %v248 = vld [vmem:[#allocation2 + $0x680] sm:$0xff]
    %v249 = vld [vmem:[#allocation2 + $0x688] sm:$0xff]
    %v250 = vld [vmem:[#allocation2 + $0x690] sm:$0xff]
    %v251 = vld [vmem:[#allocation2 + $0x698] sm:$0xff]
    %v252 = vld [vmem:[#allocation2 + $0x6a0] sm:$0xff]
    %v253 = vld [vmem:[#allocation2 + $0x6a8] sm:$0xff]
    %v254 = vld [vmem:[#allocation2 + $0x6b0] sm:$0xff]
    %v255 = vld [vmem:[#allocation2 + $0x6b8] sm:$0xff]
    %v256 = vld [vmem:[#allocation2 + $0x6c0] sm:$0xff]
    %v257 = vld [vmem:[#allocation2 + $0x6c8] sm:$0xff]
    %v258 = vld [vmem:[#allocation2 + $0x6d0] sm:$0xff]
    %v259 = vld [vmem:[#allocation2 + $0x6d8] sm:$0xff]
    %v260 = vld [vmem:[#allocation2 + $0x6e0] sm:$0xff]
    %v261 = vld [vmem:[#allocation2 + $0x6e8] sm:$0xff]
    %v262 = vld [vmem:[#allocation2 + $0x6f0] sm:$0xff]
    %v263 = vld [vmem:[#allocation2 + $0x6f8] sm:$0xff]
    %v264 = vld [vmem:[#allocation2 + $0x700] sm:$0xff]
    %v265 = vld [vmem:[#allocation2 + $0x708] sm:$0xff]
    %v266 = vld [vmem:[#allocation2 + $0x710] sm:$0xff]
    %v267 = vld [vmem:[#allocation2 + $0x718] sm:$0xff]
    %v268 = vld [vmem:[#allocation2 + $0x720] sm:$0xff]
    %v269 = vld [vmem:[#allocation2 + $0x728] sm:$0xff]
    %v270 = vld [vmem:[#allocation2 + $0x730] sm:$0xff]
    %v271 = vld [vmem:[#allocation2 + $0x738] sm:$0xff]
    %v272 = vld [vmem:[#allocation2 + $0x740] sm:$0xff]
    %v273 = vld [vmem:[#allocation2 + $0x748] sm:$0xff]
    %v274 = vld [vmem:[#allocation2 + $0x750] sm:$0xff]
    %v275 = vld [vmem:[#allocation2 + $0x758] sm:$0xff]
    %v276 = vld [vmem:[#allocation2 + $0x760] sm:$0xff]
    %v277 = vld [vmem:[#allocation2 + $0x768] sm:$0xff]
    %v278 = vld [vmem:[#allocation2 + $0x770] sm:$0xff]
    %v279 = vld [vmem:[#allocation2 + $0x778] sm:$0xff]
    %v280 = vld [vmem:[#allocation2 + $0x780] sm:$0xff]
    %v281 = vld [vmem:[#allocation2 + $0x788] sm:$0xff]
    %v282 = vld [vmem:[#allocation2 + $0x790] sm:$0xff]
    %v283 = vld [vmem:[#allocation2 + $0x798] sm:$0xff]
    %v284 = vld [vmem:[#allocation2 + $0x7a0] sm:$0xff]
    %v285 = vld [vmem:[#allocation2 + $0x7a8] sm:$0xff]
    %v286 = vld [vmem:[#allocation2 + $0x7b0] sm:$0xff]
    %v287 = vld [vmem:[#allocation2 + $0x7b8] sm:$0xff]
    %v288 = vld [vmem:[#allocation2 + $0x7c0] sm:$0xff]
    %v289 = vld [vmem:[#allocation2 + $0x7c8] sm:$0xff]
    %v290 = vld [vmem:[#allocation2 + $0x7d0] sm:$0xff]
    %v291 = vld [vmem:[#allocation2 + $0x7d8] sm:$0xff]
    %v292 = vld [vmem:[#allocation2 + $0x7e0] sm:$0xff]
    %v293 = vld [vmem:[#allocation2 + $0x7e8] sm:$0xff]
    %v294 = vld [vmem:[#allocation2 + $0x7f0] sm:$0xff]
    %v295 = vld [vmem:[#allocation2 + $0x7f8] sm:$0xff]
    %v296 = vld [vmem:[#allocation5] sm:$0xff]
    %v297 = vld [vmem:[#allocation5 + $0x8] sm:$0xff]
    %v298 = vld [vmem:[#allocation5 + $0x10] sm:$0xff]
    %v299 = vld [vmem:[#allocation5 + $0x18] sm:$0xff]
    %v300 = vld [vmem:[#allocation5 + $0x20] sm:$0xff]
    %v301 = vld [vmem:[#allocation5 + $0x28] sm:$0xff]
    %v302 = vld [vmem:[#allocation5 + $0x30] sm:$0xff]
    %v303 = vld [vmem:[#allocation5 + $0x38] sm:$0xff]
    %v304 = vld [vmem:[#allocation5 + $0x40] sm:$0xff]
    %v305 = vld [vmem:[#allocation5 + $0x48] sm:$0xff]
    %v306 = vld [vmem:[#allocation5 + $0x50] sm:$0xff]
    %v307 = vld [vmem:[#allocation5 + $0x58] sm:$0xff]
    %v308 = vld [vmem:[#allocation5 + $0x60] sm:$0xff]
    %v309 = vld [vmem:[#allocation5 + $0x68] sm:$0xff]
    %v310 = vld [vmem:[#allocation5 + $0x70] sm:$0xff]
    %v311 = vld [vmem:[#allocation5 + $0x78] sm:$0xff]
    %v312 = vld [vmem:[#allocation5 + $0x80] sm:$0xff]
    %v313 = vld [vmem:[#allocation5 + $0x88] sm:$0xff]
    %v314 = vld [vmem:[#allocation5 + $0x90] sm:$0xff]
    %v315 = vld [vmem:[#allocation5 + $0x98] sm:$0xff]
    %v316 = vld [vmem:[#allocation5 + $0xa0] sm:$0xff]
    %v317 = vld [vmem:[#allocation5 + $0xa8] sm:$0xff]
    %v318 = vld [vmem:[#allocation5 + $0xb0] sm:$0xff]
    %v319 = vld [vmem:[#allocation5 + $0xb8] sm:$0xff]
    %v320 = vld [vmem:[#allocation5 + $0xc0] sm:$0xff]
    %v321 = vld [vmem:[#allocation5 + $0xc8] sm:$0xff]
    %v322 = vld [vmem:[#allocation5 + $0xd0] sm:$0xff]
    %v323 = vld [vmem:[#allocation5 + $0xd8] sm:$0xff]
    %v324 = vld [vmem:[#allocation5 + $0xe0] sm:$0xff]
    %v325 = vld [vmem:[#allocation5 + $0xe8] sm:$0xff]
    %v326 = vld [vmem:[#allocation5 + $0xf0] sm:$0xff]
    %v327 = vld [vmem:[#allocation5 + $0xf8] sm:$0xff]
    %v328 = vmul.f32 %v40, %v296
    %v329 = vmul.f32 %v41, %v297
    %v330 = vmul.f32 %v42, %v298
    %v331 = vmul.f32 %v43, %v299
    %v332 = vmul.f32 %v44, %v300
    %v333 = vmul.f32 %v45, %v301
    %v334 = vmul.f32 %v46, %v302
    %v335 = vmul.f32 %v47, %v303
    %v336 = vmul.f32 %v48, %v304
    %v337 = vmul.f32 %v49, %v305
    %v338 = vmul.f32 %v50, %v306
    %v339 = vmul.f32 %v51, %v307
    %v340 = vmul.f32 %v52, %v308
    %v341 = vmul.f32 %v53, %v309
    %v342 = vmul.f32 %v54, %v310
    %v343 = vmul.f32 %v55, %v311
    %v344 = vmul.f32 %v56, %v312
    %v345 = vmul.f32 %v57, %v313
    %v346 = vmul.f32 %v58, %v314
    %v347 = vmul.f32 %v59, %v315
    %v348 = vmul.f32 %v60, %v316
    %v349 = vmul.f32 %v61, %v317
    %v350 = vmul.f32 %v62, %v318
    %v351 = vmul.f32 %v63, %v319
    %v352 = vmul.f32 %v64, %v320
    %v353 = vmul.f32 %v65, %v321
    %v354 = vmul.f32 %v66, %v322
    %v355 = vmul.f32 %v67, %v323
    %v356 = vmul.f32 %v68, %v324
    %v357 = vmul.f32 %v69, %v325
    %v358 = vmul.f32 %v70, %v326
    %v359 = vmul.f32 %v71, %v327
    %v360 = vmul.f32 %v72, %v296
    %v361 = vmul.f32 %v73, %v297
    %v362 = vmul.f32 %v74, %v298
    %v363 = vmul.f32 %v75, %v299
    %v364 = vmul.f32 %v76, %v300
    %v365 = vmul.f32 %v77, %v301
    %v366 = vmul.f32 %v78, %v302
    %v367 = vmul.f32 %v79, %v303
    %v368 = vmul.f32 %v80, %v304
    %v369 = vmul.f32 %v81, %v305
    %v370 = vmul.f32 %v82, %v306
    %v371 = vmul.f32 %v83, %v307
    %v372 = vmul.f32 %v84, %v308
    %v373 = vmul.f32 %v85, %v309
    %v374 = vmul.f32 %v86, %v310
    %v375 = vmul.f32 %v87, %v311
    %v376 = vmul.f32 %v88, %v312
    %v377 = vmul.f32 %v89, %v313
    %v378 = vmul.f32 %v90, %v314
    %v379 = vmul.f32 %v91, %v315
    %v380 = vmul.f32 %v92, %v316
    %v381 = vmul.f32 %v93, %v317
    %v382 = vmul.f32 %v94, %v318
    %v383 = vmul.f32 %v95, %v319
    %v384 = vmul.f32 %v96, %v320
    %v385 = vmul.f32 %v97, %v321
    %v386 = vmul.f32 %v98, %v322
    %v387 = vmul.f32 %v99, %v323
    %v388 = vmul.f32 %v100, %v324
    %v389 = vmul.f32 %v101, %v325
    %v390 = vmul.f32 %v102, %v326
    %v391 = vmul.f32 %v103, %v327
    %v392 = vmul.f32 %v104, %v296
    %v393 = vmul.f32 %v105, %v297
    %v394 = vmul.f32 %v106, %v298
    %v395 = vmul.f32 %v107, %v299
    %v396 = vmul.f32 %v108, %v300
    %v397 = vmul.f32 %v109, %v301
    %v398 = vmul.f32 %v110, %v302
    %v399 = vmul.f32 %v111, %v303
    %v400 = vmul.f32 %v112, %v304
    %v401 = vmul.f32 %v113, %v305
    %v402 = vmul.f32 %v114, %v306
    %v403 = vmul.f32 %v115, %v307
    %v404 = vmul.f32 %v116, %v308
    %v405 = vmul.f32 %v117, %v309
    %v406 = vmul.f32 %v118, %v310
    %v407 = vmul.f32 %v119, %v311
    %v408 = vmul.f32 %v120, %v312
    %v409 = vmul.f32 %v121, %v313
    %v410 = vmul.f32 %v122, %v314
    %v411 = vmul.f32 %v123, %v315
    %v412 = vmul.f32 %v124, %v316
    %v413 = vmul.f32 %v125, %v317
    %v414 = vmul.f32 %v126, %v318
    %v415 = vmul.f32 %v127, %v319
    %v416 = vmul.f32 %v128, %v320
    %v417 = vmul.f32 %v129, %v321
    %v418 = vmul.f32 %v130, %v322
    %v419 = vmul.f32 %v131, %v323
    %v420 = vmul.f32 %v132, %v324
    %v421 = vmul.f32 %v133, %v325
    %v422 = vmul.f32 %v134, %v326
    %v423 = vmul.f32 %v135, %v327
    %v424 = vmul.f32 %v136, %v296
    %v425 = vmul.f32 %v137, %v297
    %v426 = vmul.f32 %v138, %v298
    %v427 = vmul.f32 %v139, %v299
    %v428 = vmul.f32 %v140, %v300
    %v429 = vmul.f32 %v141, %v301
    %v430 = vmul.f32 %v142, %v302
    %v431 = vmul.f32 %v143, %v303
    %v432 = vmul.f32 %v144, %v304
    %v433 = vmul.f32 %v145, %v305
    %v434 = vmul.f32 %v146, %v306
    %v435 = vmul.f32 %v147, %v307
    %v436 = vmul.f32 %v148, %v308
    %v437 = vmul.f32 %v149, %v309
    %v438 = vmul.f32 %v150, %v310
    %v439 = vmul.f32 %v151, %v311
    %v440 = vmul.f32 %v152, %v312
    %v441 = vmul.f32 %v153, %v313
    %v442 = vmul.f32 %v154, %v314
    %v443 = vmul.f32 %v155, %v315
    %v444 = vmul.f32 %v156, %v316
    %v445 = vmul.f32 %v157, %v317
    %v446 = vmul.f32 %v158, %v318
    %v447 = vmul.f32 %v159, %v319
    %v448 = vmul.f32 %v160, %v320
    %v449 = vmul.f32 %v161, %v321
    %v450 = vmul.f32 %v162, %v322
    %v451 = vmul.f32 %v163, %v323
    %v452 = vmul.f32 %v164, %v324
    %v453 = vmul.f32 %v165, %v325
    %v454 = vmul.f32 %v166, %v326
    %v455 = vmul.f32 %v167, %v327
    %v456 = vmul.f32 %v168, %v296
    %v457 = vmul.f32 %v169, %v297
    %v458 = vmul.f32 %v170, %v298
    %v459 = vmul.f32 %v171, %v299
    %v460 = vmul.f32 %v172, %v300
    %v461 = vmul.f32 %v173, %v301
    %v462 = vmul.f32 %v174, %v302
    %v463 = vmul.f32 %v175, %v303
    %v464 = vmul.f32 %v176, %v304
    %v465 = vmul.f32 %v177, %v305
    %v466 = vmul.f32 %v178, %v306
    %v467 = vmul.f32 %v179, %v307
    %v468 = vmul.f32 %v180, %v308
    %v469 = vmul.f32 %v181, %v309
    %v470 = vmul.f32 %v182, %v310
    %v471 = vmul.f32 %v183, %v311
    %v472 = vmul.f32 %v184, %v312
    %v473 = vmul.f32 %v185, %v313
    %v474 = vmul.f32 %v186, %v314
    %v475 = vmul.f32 %v187, %v315
    %v476 = vmul.f32 %v188, %v316
    %v477 = vmul.f32 %v189, %v317
    %v478 = vmul.f32 %v190, %v318
    %v479 = vmul.f32 %v191, %v319
    %v480 = vmul.f32 %v192, %v320
    %v481 = vmul.f32 %v193, %v321
    %v482 = vmul.f32 %v194, %v322
    %v483 = vmul.f32 %v195, %v323
    %v484 = vmul.f32 %v196, %v324
    %v485 = vmul.f32 %v197, %v325
    %v486 = vmul.f32 %v198, %v326
    %v487 = vmul.f32 %v199, %v327
    %v488 = vmul.f32 %v200, %v296
    %v489 = vmul.f32 %v201, %v297
    %v490 = vmul.f32 %v202, %v298
    %v491 = vmul.f32 %v203, %v299
    %v492 = vmul.f32 %v204, %v300
    %v493 = vmul.f32 %v205, %v301
    %v494 = vmul.f32 %v206, %v302
    %v495 = vmul.f32 %v207, %v303
    %v496 = vmul.f32 %v208, %v304
    %v497 = vmul.f32 %v209, %v305
    %v498 = vmul.f32 %v210, %v306
    %v499 = vmul.f32 %v211, %v307
    %v500 = vmul.f32 %v212, %v308
    %v501 = vmul.f32 %v213, %v309
    %v502 = vmul.f32 %v214, %v310
    %v503 = vmul.f32 %v215, %v311
    %v504 = vmul.f32 %v216, %v312
    %v505 = vmul.f32 %v217, %v313
    %v506 = vmul.f32 %v218, %v314
    %v507 = vmul.f32 %v219, %v315
    %v508 = vmul.f32 %v220, %v316
    %v509 = vmul.f32 %v221, %v317
    %v510 = vmul.f32 %v222, %v318
    %v511 = vmul.f32 %v223, %v319
    %v512 = vmul.f32 %v224, %v320
    %v513 = vmul.f32 %v225, %v321
    %v514 = vmul.f32 %v226, %v322
    %v515 = vmul.f32 %v227, %v323
    %v516 = vmul.f32 %v228, %v324
    %v517 = vmul.f32 %v229, %v325
    %v518 = vmul.f32 %v230, %v326
    %v519 = vmul.f32 %v231, %v327
    %v520 = vmul.f32 %v232, %v296
    %v521 = vmul.f32 %v233, %v297
    %v522 = vmul.f32 %v234, %v298
    %v523 = vmul.f32 %v235, %v299
    %v524 = vmul.f32 %v236, %v300
    %v525 = vmul.f32 %v237, %v301
    %v526 = vmul.f32 %v238, %v302
    %v527 = vmul.f32 %v239, %v303
    %v528 = vmul.f32 %v240, %v304
    %v529 = vmul.f32 %v241, %v305
    %v530 = vmul.f32 %v242, %v306
    %v531 = vmul.f32 %v243, %v307
    %v532 = vmul.f32 %v244, %v308
    %v533 = vmul.f32 %v245, %v309
    %v534 = vmul.f32 %v246, %v310
    %v535 = vmul.f32 %v247, %v311
    %v536 = vmul.f32 %v248, %v312
    %v537 = vmul.f32 %v249, %v313
    %v538 = vmul.f32 %v250, %v314
    %v539 = vmul.f32 %v251, %v315
    %v540 = vmul.f32 %v252, %v316
    %v541 = vmul.f32 %v253, %v317
    %v542 = vmul.f32 %v254, %v318
    %v543 = vmul.f32 %v255, %v319
    %v544 = vmul.f32 %v256, %v320
    %v545 = vmul.f32 %v257, %v321
    %v546 = vmul.f32 %v258, %v322
    %v547 = vmul.f32 %v259, %v323
    %v548 = vmul.f32 %v260, %v324
    %v549 = vmul.f32 %v261, %v325
    %v550 = vmul.f32 %v262, %v326
    %v551 = vmul.f32 %v263, %v327
    %v552 = vmul.f32 %v264, %v296
    %v553 = vmul.f32 %v265, %v297
    %v554 = vmul.f32 %v266, %v298
    %v555 = vmul.f32 %v267, %v299
    %v556 = vmul.f32 %v268, %v300
    %v557 = vmul.f32 %v269, %v301
    %v558 = vmul.f32 %v270, %v302
    %v559 = vmul.f32 %v271, %v303
    %v560 = vmul.f32 %v272, %v304
    %v561 = vmul.f32 %v273, %v305
    %v562 = vmul.f32 %v274, %v306
    %v563 = vmul.f32 %v275, %v307
    %v564 = vmul.f32 %v276, %v308
    %v565 = vmul.f32 %v277, %v309
    %v566 = vmul.f32 %v278, %v310
    %v567 = vmul.f32 %v279, %v311
    %v568 = vmul.f32 %v280, %v312
    %v569 = vmul.f32 %v281, %v313
    %v570 = vmul.f32 %v282, %v314
    %v571 = vmul.f32 %v283, %v315
    %v572 = vmul.f32 %v284, %v316
    %v573 = vmul.f32 %v285, %v317
    %v574 = vmul.f32 %v286, %v318
    %v575 = vmul.f32 %v287, %v319
    %v576 = vmul.f32 %v288, %v320
    %v577 = vmul.f32 %v289, %v321
    %v578 = vmul.f32 %v290, %v322
    %v579 = vmul.f32 %v291, %v323
    %v580 = vmul.f32 %v292, %v324
    %v581 = vmul.f32 %v293, %v325
    %v582 = vmul.f32 %v294, %v326
    %v583 = vmul.f32 %v295, %v327
    %v584 = vadd.f32 %v328, %v329
    %585 = vadd.xlane.f32.xlu0 %v584
    %v586 = vpop.xlane.xlu0 %585
    %v587 = vadd.f32 %v330, %v331
    %588 = vadd.xlane.f32.xlu0 %v587
    %v589 = vpop.xlane.xlu0 %588
    %v590 = vadd.f32 %v332, %v333
    %591 = vadd.xlane.f32.xlu0 %v590
    %v592 = vpop.xlane.xlu0 %591
    %v593 = vadd.f32 %v334, %v335
    %594 = vadd.xlane.f32.xlu0 %v593
    %v595 = vpop.xlane.xlu0 %594
    %v596 = vadd.f32 %v336, %v337
    %597 = vadd.xlane.f32.xlu0 %v596
    %v598 = vpop.xlane.xlu0 %597
    %v599 = vadd.f32 %v338, %v339
    %600 = vadd.xlane.f32.xlu0 %v599
    %v601 = vpop.xlane.xlu0 %600
    %v602 = vadd.f32 %v340, %v341
    %603 = vadd.xlane.f32.xlu0 %v602
    %v604 = vpop.xlane.xlu0 %603
    %v605 = vadd.f32 %v342, %v343
    %606 = vadd.xlane.f32.xlu0 %v605
    %v607 = vpop.xlane.xlu0 %606
    %v608 = vadd.f32 %v344, %v345
    %609 = vadd.xlane.f32.xlu0 %v608
    %v610 = vpop.xlane.xlu0 %609
    %v611 = vadd.f32 %v346, %v347
    %612 = vadd.xlane.f32.xlu0 %v611
    %v613 = vpop.xlane.xlu0 %612
    %v614 = vadd.f32 %v348, %v349
    %615 = vadd.xlane.f32.xlu0 %v614
    %v616 = vpop.xlane.xlu0 %615
    %v617 = vadd.f32 %v350, %v351
    %618 = vadd.xlane.f32.xlu0 %v617
    %v619 = vpop.xlane.xlu0 %618
    %v620 = vadd.f32 %v352, %v353
    %621 = vadd.xlane.f32.xlu0 %v620
    %v622 = vpop.xlane.xlu0 %621
    %v623 = vadd.f32 %v354, %v355
    %624 = vadd.xlane.f32.xlu0 %v623
    %v625 = vpop.xlane.xlu0 %624
    %v626 = vadd.f32 %v356, %v357
    %627 = vadd.xlane.f32.xlu0 %v626
    %v628 = vpop.xlane.xlu0 %627
    %v629 = vadd.f32 %v358, %v359
    %630 = vadd.xlane.f32.xlu0 %v629
    %v631 = vpop.xlane.xlu0 %630
    %v632 = vadd.f32 %v360, %v361
    %633 = vadd.xlane.f32.xlu0 %v632
    %v634 = vpop.xlane.xlu0 %633
    %v635 = vadd.f32 %v362, %v363
    %636 = vadd.xlane.f32.xlu0 %v635
    %v637 = vpop.xlane.xlu0 %636
    %v638 = vadd.f32 %v364, %v365
    %639 = vadd.xlane.f32.xlu0 %v638
    %v640 = vpop.xlane.xlu0 %639
    %v641 = vadd.f32 %v366, %v367
    %642 = vadd.xlane.f32.xlu0 %v641
    %v643 = vpop.xlane.xlu0 %642
    %v644 = vadd.f32 %v368, %v369
    %645 = vadd.xlane.f32.xlu0 %v644
    %v646 = vpop.xlane.xlu0 %645
    %v647 = vadd.f32 %v370, %v371
    %648 = vadd.xlane.f32.xlu0 %v647
    %v649 = vpop.xlane.xlu0 %648
    %v650 = vadd.f32 %v372, %v373
    %651 = vadd.xlane.f32.xlu0 %v650
    %v652 = vpop.xlane.xlu0 %651
    %v653 = vadd.f32 %v374, %v375
    %654 = vadd.xlane.f32.xlu0 %v653
    %v655 = vpop.xlane.xlu0 %654
    %v656 = vadd.f32 %v376, %v377
    %657 = vadd.xlane.f32.xlu0 %v656
    %v658 = vpop.xlane.xlu0 %657
    %v659 = vadd.f32 %v378, %v379
    %660 = vadd.xlane.f32.xlu0 %v659
    %v661 = vpop.xlane.xlu0 %660
    %v662 = vadd.f32 %v380, %v381
    %663 = vadd.xlane.f32.xlu0 %v662
    %v664 = vpop.xlane.xlu0 %663
    %v665 = vadd.f32 %v382, %v383
    %666 = vadd.xlane.f32.xlu0 %v665
    %v667 = vpop.xlane.xlu0 %666
    %v668 = vadd.f32 %v384, %v385
    %669 = vadd.xlane.f32.xlu0 %v668
    %v670 = vpop.xlane.xlu0 %669
    %v671 = vadd.f32 %v386, %v387
    %672 = vadd.xlane.f32.xlu0 %v671
    %v673 = vpop.xlane.xlu0 %672
    %v674 = vadd.f32 %v388, %v389
    %675 = vadd.xlane.f32.xlu0 %v674
    %v676 = vpop.xlane.xlu0 %675
    %v677 = vadd.f32 %v390, %v391
    %678 = vadd.xlane.f32.xlu0 %v677
    %v679 = vpop.xlane.xlu0 %678
    %v680 = vadd.f32 %v392, %v393
    %681 = vadd.xlane.f32.xlu0 %v680
    %v682 = vpop.xlane.xlu0 %681
    %v683 = vadd.f32 %v394, %v395
    %684 = vadd.xlane.f32.xlu0 %v683
    %v685 = vpop.xlane.xlu0 %684
    %v686 = vadd.f32 %v396, %v397
    %687 = vadd.xlane.f32.xlu0 %v686
    %v688 = vpop.xlane.xlu0 %687
    %v689 = vadd.f32 %v398, %v399
    %690 = vadd.xlane.f32.xlu0 %v689
    %v691 = vpop.xlane.xlu0 %690
    %v692 = vadd.f32 %v400, %v401
    %693 = vadd.xlane.f32.xlu0 %v692
    %v694 = vpop.xlane.xlu0 %693
    %v695 = vadd.f32 %v402, %v403
    %696 = vadd.xlane.f32.xlu0 %v695
    %v697 = vpop.xlane.xlu0 %696
    %v698 = vadd.f32 %v404, %v405
    %699 = vadd.xlane.f32.xlu0 %v698
    %v700 = vpop.xlane.xlu0 %699
    %v701 = vadd.f32 %v406, %v407
    %702 = vadd.xlane.f32.xlu0 %v701
    %v703 = vpop.xlane.xlu0 %702
    %v704 = vadd.f32 %v408, %v409
    %705 = vadd.xlane.f32.xlu0 %v704
    %v706 = vpop.xlane.xlu0 %705
    %v707 = vadd.f32 %v410, %v411
    %708 = vadd.xlane.f32.xlu0 %v707
    %v709 = vpop.xlane.xlu0 %708
    %v710 = vadd.f32 %v412, %v413
    %711 = vadd.xlane.f32.xlu0 %v710
    %v712 = vpop.xlane.xlu0 %711
    %v713 = vadd.f32 %v414, %v415
    %714 = vadd.xlane.f32.xlu0 %v713
    %v715 = vpop.xlane.xlu0 %714
    %v716 = vadd.f32 %v416, %v417
    %717 = vadd.xlane.f32.xlu0 %v716
    %v718 = vpop.xlane.xlu0 %717
    %v719 = vadd.f32 %v418, %v419
    %720 = vadd.xlane.f32.xlu0 %v719
    %v721 = vpop.xlane.xlu0 %720
    %v722 = vadd.f32 %v420, %v421
    %723 = vadd.xlane.f32.xlu0 %v722
    %v724 = vpop.xlane.xlu0 %723
    %v725 = vadd.f32 %v422, %v423
    %726 = vadd.xlane.f32.xlu0 %v725
    %v727 = vpop.xlane.xlu0 %726
    %v728 = vadd.f32 %v424, %v425
    %729 = vadd.xlane.f32.xlu0 %v728
    %v730 = vpop.xlane.xlu0 %729
    %v731 = vadd.f32 %v426, %v427
    %732 = vadd.xlane.f32.xlu0 %v731
    %v733 = vpop.xlane.xlu0 %732
    %v734 = vadd.f32 %v428, %v429
    %735 = vadd.xlane.f32.xlu0 %v734
    %v736 = vpop.xlane.xlu0 %735
    %v737 = vadd.f32 %v430, %v431
    %738 = vadd.xlane.f32.xlu0 %v737
    %v739 = vpop.xlane.xlu0 %738
    %v740 = vadd.f32 %v432, %v433
    %741 = vadd.xlane.f32.xlu0 %v740
    %v742 = vpop.xlane.xlu0 %741
    %v743 = vadd.f32 %v434, %v435
    %744 = vadd.xlane.f32.xlu0 %v743
    %v745 = vpop.xlane.xlu0 %744
    %v746 = vadd.f32 %v436, %v437
    %747 = vadd.xlane.f32.xlu0 %v746
    %v748 = vpop.xlane.xlu0 %747
    %v749 = vadd.f32 %v438, %v439
    %750 = vadd.xlane.f32.xlu0 %v749
    %v751 = vpop.xlane.xlu0 %750
    %v752 = vadd.f32 %v440, %v441
    %753 = vadd.xlane.f32.xlu0 %v752
    %v754 = vpop.xlane.xlu0 %753
    %v755 = vadd.f32 %v442, %v443
    %756 = vadd.xlane.f32.xlu0 %v755
    %v757 = vpop.xlane.xlu0 %756
    %v758 = vadd.f32 %v444, %v445
    %759 = vadd.xlane.f32.xlu0 %v758
    %v760 = vpop.xlane.xlu0 %759
    %v761 = vadd.f32 %v446, %v447
    %762 = vadd.xlane.f32.xlu0 %v761
    %v763 = vpop.xlane.xlu0 %762
    %v764 = vadd.f32 %v448, %v449
    %765 = vadd.xlane.f32.xlu0 %v764
    %v766 = vpop.xlane.xlu0 %765
    %v767 = vadd.f32 %v450, %v451
    %768 = vadd.xlane.f32.xlu0 %v767
    %v769 = vpop.xlane.xlu0 %768
    %v770 = vadd.f32 %v452, %v453
    %771 = vadd.xlane.f32.xlu0 %v770
    %v772 = vpop.xlane.xlu0 %771
    %v773 = vadd.f32 %v454, %v455
    %774 = vadd.xlane.f32.xlu0 %v773
    %v775 = vpop.xlane.xlu0 %774
    %v776 = vadd.f32 %v456, %v457
    %777 = vadd.xlane.f32.xlu0 %v776
    %v778 = vpop.xlane.xlu0 %777
    %v779 = vadd.f32 %v458, %v459
    %780 = vadd.xlane.f32.xlu0 %v779
    %v781 = vpop.xlane.xlu0 %780
    %v782 = vadd.f32 %v460, %v461
    %783 = vadd.xlane.f32.xlu0 %v782
    %v784 = vpop.xlane.xlu0 %783
    %v785 = vadd.f32 %v462, %v463
    %786 = vadd.xlane.f32.xlu0 %v785
    %v787 = vpop.xlane.xlu0 %786
    %v788 = vadd.f32 %v464, %v465
    %789 = vadd.xlane.f32.xlu0 %v788
    %v790 = vpop.xlane.xlu0 %789
    %v791 = vadd.f32 %v466, %v467
    %792 = vadd.xlane.f32.xlu0 %v791
    %v793 = vpop.xlane.xlu0 %792
    %v794 = vadd.f32 %v468, %v469
    %795 = vadd.xlane.f32.xlu0 %v794
    %v796 = vpop.xlane.xlu0 %795
    %v797 = vadd.f32 %v470, %v471
    %798 = vadd.xlane.f32.xlu0 %v797
    %v799 = vpop.xlane.xlu0 %798
    %v800 = vadd.f32 %v472, %v473
    %801 = vadd.xlane.f32.xlu0 %v800
    %v802 = vpop.xlane.xlu0 %801
    %v803 = vadd.f32 %v474, %v475
    %804 = vadd.xlane.f32.xlu0 %v803
    %v805 = vpop.xlane.xlu0 %804
    %v806 = vadd.f32 %v476, %v477
    %807 = vadd.xlane.f32.xlu0 %v806
    %v808 = vpop.xlane.xlu0 %807
    %v809 = vadd.f32 %v478, %v479
    %810 = vadd.xlane.f32.xlu0 %v809
    %v811 = vpop.xlane.xlu0 %810
    %v812 = vadd.f32 %v480, %v481
    %813 = vadd.xlane.f32.xlu0 %v812
    %v814 = vpop.xlane.xlu0 %813
    %v815 = vadd.f32 %v482, %v483
    %816 = vadd.xlane.f32.xlu0 %v815
    %v817 = vpop.xlane.xlu0 %816
    %v818 = vadd.f32 %v484, %v485
    %819 = vadd.xlane.f32.xlu0 %v818
    %v820 = vpop.xlane.xlu0 %819
    %v821 = vadd.f32 %v486, %v487
    %822 = vadd.xlane.f32.xlu0 %v821
    %v823 = vpop.xlane.xlu0 %822
    %v824 = vadd.f32 %v488, %v489
    %825 = vadd.xlane.f32.xlu0 %v824
    %v826 = vpop.xlane.xlu0 %825
    %v827 = vadd.f32 %v490, %v491
    %828 = vadd.xlane.f32.xlu0 %v827
    %v829 = vpop.xlane.xlu0 %828
    %v830 = vadd.f32 %v492, %v493
    %831 = vadd.xlane.f32.xlu0 %v830
    %v832 = vpop.xlane.xlu0 %831
    %v833 = vadd.f32 %v494, %v495
    %834 = vadd.xlane.f32.xlu0 %v833
    %v835 = vpop.xlane.xlu0 %834
    %v836 = vadd.f32 %v496, %v497
    %837 = vadd.xlane.f32.xlu0 %v836
    %v838 = vpop.xlane.xlu0 %837
    %v839 = vadd.f32 %v498, %v499
    %840 = vadd.xlane.f32.xlu0 %v839
    %v841 = vpop.xlane.xlu0 %840
    %v842 = vadd.f32 %v500, %v501
    %843 = vadd.xlane.f32.xlu0 %v842
    %v844 = vpop.xlane.xlu0 %843
    %v845 = vadd.f32 %v502, %v503
    %846 = vadd.xlane.f32.xlu0 %v845
    %v847 = vpop.xlane.xlu0 %846
    %v848 = vadd.f32 %v504, %v505
    %849 = vadd.xlane.f32.xlu0 %v848
    %v850 = vpop.xlane.xlu0 %849
    %v851 = vadd.f32 %v506, %v507
    %852 = vadd.xlane.f32.xlu0 %v851
    %v853 = vpop.xlane.xlu0 %852
    %v854 = vadd.f32 %v508, %v509
    %855 = vadd.xlane.f32.xlu0 %v854
    %v856 = vpop.xlane.xlu0 %855
    %v857 = vadd.f32 %v510, %v511
    %858 = vadd.xlane.f32.xlu0 %v857
    %v859 = vpop.xlane.xlu0 %858
    %v860 = vadd.f32 %v512, %v513
    %861 = vadd.xlane.f32.xlu0 %v860
    %v862 = vpop.xlane.xlu0 %861
    %v863 = vadd.f32 %v514, %v515
    %864 = vadd.xlane.f32.xlu0 %v863
    %v865 = vpop.xlane.xlu0 %864
    %v866 = vadd.f32 %v516, %v517
    %867 = vadd.xlane.f32.xlu0 %v866
    %v868 = vpop.xlane.xlu0 %867
    %v869 = vadd.f32 %v518, %v519
    %870 = vadd.xlane.f32.xlu0 %v869
    %v871 = vpop.xlane.xlu0 %870
    %v872 = vadd.f32 %v520, %v521
    %873 = vadd.xlane.f32.xlu0 %v872
    %v874 = vpop.xlane.xlu0 %873
    %v875 = vadd.f32 %v522, %v523
    %876 = vadd.xlane.f32.xlu0 %v875
    %v877 = vpop.xlane.xlu0 %876
    %v878 = vadd.f32 %v524, %v525
    %879 = vadd.xlane.f32.xlu0 %v878
    %v880 = vpop.xlane.xlu0 %879
    %v881 = vadd.f32 %v526, %v527
    %882 = vadd.xlane.f32.xlu0 %v881
    %v883 = vpop.xlane.xlu0 %882
    %v884 = vadd.f32 %v528, %v529
    %885 = vadd.xlane.f32.xlu0 %v884
    %v886 = vpop.xlane.xlu0 %885
    %v887 = vadd.f32 %v530, %v531
    %888 = vadd.xlane.f32.xlu0 %v887
    %v889 = vpop.xlane.xlu0 %888
    %v890 = vadd.f32 %v532, %v533
    %891 = vadd.xlane.f32.xlu0 %v890
    %v892 = vpop.xlane.xlu0 %891
    %v893 = vadd.f32 %v534, %v535
    %894 = vadd.xlane.f32.xlu0 %v893
    %v895 = vpop.xlane.xlu0 %894
    %v896 = vadd.f32 %v536, %v537
    %897 = vadd.xlane.f32.xlu0 %v896
    %v898 = vpop.xlane.xlu0 %897
    %v899 = vadd.f32 %v538, %v539
    %900 = vadd.xlane.f32.xlu0 %v899
    %v901 = vpop.xlane.xlu0 %900
    %v902 = vadd.f32 %v540, %v541
    %903 = vadd.xlane.f32.xlu0 %v902
    %v904 = vpop.xlane.xlu0 %903
    %v905 = vadd.f32 %v542, %v543
    %906 = vadd.xlane.f32.xlu0 %v905
    %v907 = vpop.xlane.xlu0 %906
    %v908 = vadd.f32 %v544, %v545
    %909 = vadd.xlane.f32.xlu0 %v908
    %v910 = vpop.xlane.xlu0 %909
    %v911 = vadd.f32 %v546, %v547
    %912 = vadd.xlane.f32.xlu0 %v911
    %v913 = vpop.xlane.xlu0 %912
    %v914 = vadd.f32 %v548, %v549
    %915 = vadd.xlane.f32.xlu0 %v914
    %v916 = vpop.xlane.xlu0 %915
    %v917 = vadd.f32 %v550, %v551
    %918 = vadd.xlane.f32.xlu0 %v917
    %v919 = vpop.xlane.xlu0 %918
    %v920 = vadd.f32 %v552, %v553
    %921 = vadd.xlane.f32.xlu0 %v920
    %v922 = vpop.xlane.xlu0 %921
    %v923 = vadd.f32 %v554, %v555
    %924 = vadd.xlane.f32.xlu0 %v923
    %v925 = vpop.xlane.xlu0 %924
    %v926 = vadd.f32 %v556, %v557
    %927 = vadd.xlane.f32.xlu0 %v926
    %v928 = vpop.xlane.xlu0 %927
    %v929 = vadd.f32 %v558, %v559
    %930 = vadd.xlane.f32.xlu0 %v929
    %v931 = vpop.xlane.xlu0 %930
    %v932 = vadd.f32 %v560, %v561
    %933 = vadd.xlane.f32.xlu0 %v932
    %v934 = vpop.xlane.xlu0 %933
    %v935 = vadd.f32 %v562, %v563
    %936 = vadd.xlane.f32.xlu0 %v935
    %v937 = vpop.xlane.xlu0 %936
    %v938 = vadd.f32 %v564, %v565
    %939 = vadd.xlane.f32.xlu0 %v938
    %v940 = vpop.xlane.xlu0 %939
    %v941 = vadd.f32 %v566, %v567
    %942 = vadd.xlane.f32.xlu0 %v941
    %v943 = vpop.xlane.xlu0 %942
    %v944 = vadd.f32 %v568, %v569
    %945 = vadd.xlane.f32.xlu0 %v944
    %v946 = vpop.xlane.xlu0 %945
    %v947 = vadd.f32 %v570, %v571
    %948 = vadd.xlane.f32.xlu0 %v947
    %v949 = vpop.xlane.xlu0 %948
    %v950 = vadd.f32 %v572, %v573
    %951 = vadd.xlane.f32.xlu0 %v950
    %v952 = vpop.xlane.xlu0 %951
    %v953 = vadd.f32 %v574, %v575
    %954 = vadd.xlane.f32.xlu0 %v953
    %v955 = vpop.xlane.xlu0 %954
    %v956 = vadd.f32 %v576, %v577
    %957 = vadd.xlane.f32.xlu0 %v956
    %v958 = vpop.xlane.xlu0 %957
    %v959 = vadd.f32 %v578, %v579
    %960 = vadd.xlane.f32.xlu0 %v959
    %v961 = vpop.xlane.xlu0 %960
    %v962 = vadd.f32 %v580, %v581
    %963 = vadd.xlane.f32.xlu0 %v962
    %v964 = vpop.xlane.xlu0 %963
    %v965 = vadd.f32 %v582, %v583
    %966 = vadd.xlane.f32.xlu0 %v965
    %v967 = vpop.xlane.xlu0 %966
    %v1096 = vlaneseq
    %v1097 = vand.u32 %v1096, 127
    %v1098 = vlaneseq
    %v1099 = vshrl.u32 %v1098, 7
    %v1100 = vsub.s32 %v1097, %v1099
    %v1101 = vrot.slane %v586, %v1100
    %v1102 = vadd.s32 %v1097, 4294967288
    %v1103 = vlaneseq
    %v1104 = vshrl.u32 %v1103, 7
    %v1105 = vsub.s32 %v1102, %v1104
    %v1106 = vrot.slane %v589, %v1105
    %vm1107 = vcmask 130112
    %v1108 = vsel %vm1107, %v1106, %v1101
    %v1109 = vadd.s32 %v1097, 4294967280
    %v1110 = vlaneseq
    %v1111 = vshrl.u32 %v1110, 7
    %v1112 = vsub.s32 %v1109, %v1111
    %v1113 = vrot.slane %v592, %v1112
    %vm1114 = vcmask 195712
    %v1115 = vsel %vm1114, %v1113, %v1108
    %v1116 = vadd.s32 %v1097, 4294967272
    %v1117 = vlaneseq
    %v1118 = vshrl.u32 %v1117, 7
    %v1119 = vsub.s32 %v1116, %v1118
    %v1120 = vrot.slane %v595, %v1119
    %vm1121 = vcmask 261312
    %v1122 = vsel %vm1121, %v1120, %v1115
    %v1123 = vadd.s32 %v1097, 4294967264
    %v1124 = vlaneseq
    %v1125 = vshrl.u32 %v1124, 7
    %v1126 = vsub.s32 %v1123, %v1125
    %v1127 = vrot.slane %v598, %v1126
    %vm1128 = vcmask 326912
    %v1129 = vsel %vm1128, %v1127, %v1122
    %v1130 = vadd.s32 %v1097, 4294967256
    %v1131 = vlaneseq
    %v1132 = vshrl.u32 %v1131, 7
    %v1133 = vsub.s32 %v1130, %v1132
    %v1134 = vrot.slane %v601, %v1133
    %vm1135 = vcmask 392512
    %v1136 = vsel %vm1135, %v1134, %v1129
    %v1137 = vadd.s32 %v1097, 4294967248
    %v1138 = vlaneseq
    %v1139 = vshrl.u32 %v1138, 7
    %v1140 = vsub.s32 %v1137, %v1139
    %v1141 = vrot.slane %v604, %v1140
    %vm1142 = vcmask 458112
    %v1143 = vsel %vm1142, %v1141, %v1136
    %v1144 = vadd.s32 %v1097, 4294967240
    %v1145 = vlaneseq
    %v1146 = vshrl.u32 %v1145, 7
    %v1147 = vsub.s32 %v1144, %v1146
    %v1148 = vrot.slane %v607, %v1147
    %vm1149 = vcmask 523712
    %v1150 = vsel %vm1149, %v1148, %v1143
    %v1151 = vadd.s32 %v1097, 4294967232
    %v1152 = vlaneseq
    %v1153 = vshrl.u32 %v1152, 7
    %v1154 = vsub.s32 %v1151, %v1153
    %v1155 = vrot.slane %v610, %v1154
    %vm1156 = vcmask 589312
    %v1157 = vsel %vm1156, %v1155, %v1150
    %v1158 = vadd.s32 %v1097, 4294967224
    %v1159 = vlaneseq
    %v1160 = vshrl.u32 %v1159, 7
    %v1161 = vsub.s32 %v1158, %v1160
    %v1162 = vrot.slane %v613, %v1161
    %vm1163 = vcmask 654912
    %v1164 = vsel %vm1163, %v1162, %v1157
    %v1165 = vadd.s32 %v1097, 4294967216
    %v1166 = vlaneseq
    %v1167 = vshrl.u32 %v1166, 7
    %v1168 = vsub.s32 %v1165, %v1167
    %v1169 = vrot.slane %v616, %v1168
    %vm1170 = vcmask 720512
    %v1171 = vsel %vm1170, %v1169, %v1164
    %v1172 = vadd.s32 %v1097, 4294967208
    %v1173 = vlaneseq
    %v1174 = vshrl.u32 %v1173, 7
    %v1175 = vsub.s32 %v1172, %v1174
    %v1176 = vrot.slane %v619, %v1175
    %vm1177 = vcmask 786112
    %v1178 = vsel %vm1177, %v1176, %v1171
    %v1179 = vadd.s32 %v1097, 4294967200
    %v1180 = vlaneseq
    %v1181 = vshrl.u32 %v1180, 7
    %v1182 = vsub.s32 %v1179, %v1181
    %v1183 = vrot.slane %v622, %v1182
    %vm1184 = vcmask 851712
    %v1185 = vsel %vm1184, %v1183, %v1178
    %v1186 = vadd.s32 %v1097, 4294967192
    %v1187 = vlaneseq
    %v1188 = vshrl.u32 %v1187, 7
    %v1189 = vsub.s32 %v1186, %v1188
    %v1190 = vrot.slane %v625, %v1189
    %vm1191 = vcmask 917312
    %v1192 = vsel %vm1191, %v1190, %v1185
    %v1193 = vadd.s32 %v1097, 4294967184
    %v1194 = vlaneseq
    %v1195 = vshrl.u32 %v1194, 7
    %v1196 = vsub.s32 %v1193, %v1195
    %v1197 = vrot.slane %v628, %v1196
    %vm1198 = vcmask 982912
    %v1199 = vsel %vm1198, %v1197, %v1192
    %v1200 = vadd.s32 %v1097, 4294967176
    %v1201 = vlaneseq
    %v1202 = vshrl.u32 %v1201, 7
    %v1203 = vsub.s32 %v1200, %v1202
    %v1204 = vrot.slane %v631, %v1203
    %vm1205 = vcmask 1048512
    %v1206 = vsel %vm1205, %v1204, %v1199
    %v1207 = vlaneseq
    %v1208 = vshrl.u32 %v1207, 7
    %v1209 = vsub.s32 %v1097, %v1208
    %v1210 = vrot.slane %v634, %v1209
    %v1211 = vlaneseq
    %v1212 = vshrl.u32 %v1211, 7
    %v1213 = vsub.s32 %v1102, %v1212
    %v1214 = vrot.slane %v637, %v1213
    %v1215 = vsel %vm1107, %v1214, %v1210
    %v1216 = vlaneseq
    %v1217 = vshrl.u32 %v1216, 7
    %v1218 = vsub.s32 %v1109, %v1217
    %v1219 = vrot.slane %v640, %v1218
    %v1220 = vsel %vm1114, %v1219, %v1215
    %v1221 = vlaneseq
    %v1222 = vshrl.u32 %v1221, 7
    %v1223 = vsub.s32 %v1116, %v1222
    %v1224 = vrot.slane %v643, %v1223
    %v1225 = vsel %vm1121, %v1224, %v1220
    %v1226 = vlaneseq
    %v1227 = vshrl.u32 %v1226, 7
    %v1228 = vsub.s32 %v1123, %v1227
    %v1229 = vrot.slane %v646, %v1228
    %v1230 = vsel %vm1128, %v1229, %v1225
    %v1231 = vlaneseq
    %v1232 = vshrl.u32 %v1231, 7
    %v1233 = vsub.s32 %v1130, %v1232
    %v1234 = vrot.slane %v649, %v1233
    %v1235 = vsel %vm1135, %v1234, %v1230
    %v1236 = vlaneseq
    %v1237 = vshrl.u32 %v1236, 7
    %v1238 = vsub.s32 %v1137, %v1237
    %v1239 = vrot.slane %v652, %v1238
    %v1240 = vsel %vm1142, %v1239, %v1235
    %v1241 = vlaneseq
    %v1242 = vshrl.u32 %v1241, 7
    %v1243 = vsub.s32 %v1144, %v1242
    %v1244 = vrot.slane %v655, %v1243
    %v1245 = vsel %vm1149, %v1244, %v1240
    %v1246 = vlaneseq
    %v1247 = vshrl.u32 %v1246, 7
    %v1248 = vsub.s32 %v1151, %v1247
    %v1249 = vrot.slane %v658, %v1248
    %v1250 = vsel %vm1156, %v1249, %v1245
    %v1251 = vlaneseq
    %v1252 = vshrl.u32 %v1251, 7
    %v1253 = vsub.s32 %v1158, %v1252
    %v1254 = vrot.slane %v661, %v1253
    %v1255 = vsel %vm1163, %v1254, %v1250
    %v1256 = vlaneseq
    %v1257 = vshrl.u32 %v1256, 7
    %v1258 = vsub.s32 %v1165, %v1257
    %v1259 = vrot.slane %v664, %v1258
    %v1260 = vsel %vm1170, %v1259, %v1255
    %v1261 = vlaneseq
    %v1262 = vshrl.u32 %v1261, 7
    %v1263 = vsub.s32 %v1172, %v1262
    %v1264 = vrot.slane %v667, %v1263
    %v1265 = vsel %vm1177, %v1264, %v1260
    %v1266 = vlaneseq
    %v1267 = vshrl.u32 %v1266, 7
    %v1268 = vsub.s32 %v1179, %v1267
    %v1269 = vrot.slane %v670, %v1268
    %v1270 = vsel %vm1184, %v1269, %v1265
    %v1271 = vlaneseq
    %v1272 = vshrl.u32 %v1271, 7
    %v1273 = vsub.s32 %v1186, %v1272
    %v1274 = vrot.slane %v673, %v1273
    %v1275 = vsel %vm1191, %v1274, %v1270
    %v1276 = vlaneseq
    %v1277 = vshrl.u32 %v1276, 7
    %v1278 = vsub.s32 %v1193, %v1277
    %v1279 = vrot.slane %v676, %v1278
    %v1280 = vsel %vm1198, %v1279, %v1275
    %v1281 = vlaneseq
    %v1282 = vshrl.u32 %v1281, 7
    %v1283 = vsub.s32 %v1200, %v1282
    %v1284 = vrot.slane %v679, %v1283
    %v1285 = vsel %vm1205, %v1284, %v1280
    %v1286 = vlaneseq
    %v1287 = vshrl.u32 %v1286, 7
    %v1288 = vsub.s32 %v1097, %v1287
    %v1289 = vrot.slane %v682, %v1288
    %v1290 = vlaneseq
    %v1291 = vshrl.u32 %v1290, 7
    %v1292 = vsub.s32 %v1102, %v1291
    %v1293 = vrot.slane %v685, %v1292
    %v1294 = vsel %vm1107, %v1293, %v1289
    %v1295 = vlaneseq
    %v1296 = vshrl.u32 %v1295, 7
    %v1297 = vsub.s32 %v1109, %v1296
    %v1298 = vrot.slane %v688, %v1297
    %v1299 = vsel %vm1114, %v1298, %v1294
    %v1300 = vlaneseq
    %v1301 = vshrl.u32 %v1300, 7
    %v1302 = vsub.s32 %v1116, %v1301
    %v1303 = vrot.slane %v691, %v1302
    %v1304 = vsel %vm1121, %v1303, %v1299
    %v1305 = vlaneseq
    %v1306 = vshrl.u32 %v1305, 7
    %v1307 = vsub.s32 %v1123, %v1306
    %v1308 = vrot.slane %v694, %v1307
    %v1309 = vsel %vm1128, %v1308, %v1304
    %v1310 = vlaneseq
    %v1311 = vshrl.u32 %v1310, 7
    %v1312 = vsub.s32 %v1130, %v1311
    %v1313 = vrot.slane %v697, %v1312
    %v1314 = vsel %vm1135, %v1313, %v1309
    %v1315 = vlaneseq
    %v1316 = vshrl.u32 %v1315, 7
    %v1317 = vsub.s32 %v1137, %v1316
    %v1318 = vrot.slane %v700, %v1317
    %v1319 = vsel %vm1142, %v1318, %v1314
    %v1320 = vlaneseq
    %v1321 = vshrl.u32 %v1320, 7
    %v1322 = vsub.s32 %v1144, %v1321
    %v1323 = vrot.slane %v703, %v1322
    %v1324 = vsel %vm1149, %v1323, %v1319
    %v1325 = vlaneseq
    %v1326 = vshrl.u32 %v1325, 7
    %v1327 = vsub.s32 %v1151, %v1326
    %v1328 = vrot.slane %v706, %v1327
    %v1329 = vsel %vm1156, %v1328, %v1324
    %v1330 = vlaneseq
    %v1331 = vshrl.u32 %v1330, 7
    %v1332 = vsub.s32 %v1158, %v1331
    %v1333 = vrot.slane %v709, %v1332
    %v1334 = vsel %vm1163, %v1333, %v1329
    %v1335 = vlaneseq
    %v1336 = vshrl.u32 %v1335, 7
    %v1337 = vsub.s32 %v1165, %v1336
    %v1338 = vrot.slane %v712, %v1337
    %v1339 = vsel %vm1170, %v1338, %v1334
    %v1340 = vlaneseq
    %v1341 = vshrl.u32 %v1340, 7
    %v1342 = vsub.s32 %v1172, %v1341
    %v1343 = vrot.slane %v715, %v1342
    %v1344 = vsel %vm1177, %v1343, %v1339
    %v1345 = vlaneseq
    %v1346 = vshrl.u32 %v1345, 7
    %v1347 = vsub.s32 %v1179, %v1346
    %v1348 = vrot.slane %v718, %v1347
    %v1349 = vsel %vm1184, %v1348, %v1344
    %v1350 = vlaneseq
    %v1351 = vshrl.u32 %v1350, 7
    %v1352 = vsub.s32 %v1186, %v1351
    %v1353 = vrot.slane %v721, %v1352
    %v1354 = vsel %vm1191, %v1353, %v1349
    %v1355 = vlaneseq
    %v1356 = vshrl.u32 %v1355, 7
    %v1357 = vsub.s32 %v1193, %v1356
    %v1358 = vrot.slane %v724, %v1357
    %v1359 = vsel %vm1198, %v1358, %v1354
    %v1360 = vlaneseq
    %v1361 = vshrl.u32 %v1360, 7
    %v1362 = vsub.s32 %v1200, %v1361
    %v1363 = vrot.slane %v727, %v1362
    %v1364 = vsel %vm1205, %v1363, %v1359
    %v1365 = vlaneseq
    %v1366 = vshrl.u32 %v1365, 7
    %v1367 = vsub.s32 %v1097, %v1366
    %v1368 = vrot.slane %v730, %v1367
    %v1369 = vlaneseq
    %v1370 = vshrl.u32 %v1369, 7
    %v1371 = vsub.s32 %v1102, %v1370
    %v1372 = vrot.slane %v733, %v1371
    %v1373 = vsel %vm1107, %v1372, %v1368
    %v1374 = vlaneseq
    %v1375 = vshrl.u32 %v1374, 7
    %v1376 = vsub.s32 %v1109, %v1375
    %v1377 = vrot.slane %v736, %v1376
    %v1378 = vsel %vm1114, %v1377, %v1373
    %v1379 = vlaneseq
    %v1380 = vshrl.u32 %v1379, 7
    %v1381 = vsub.s32 %v1116, %v1380
    %v1382 = vrot.slane %v739, %v1381
    %v1383 = vsel %vm1121, %v1382, %v1378
    %v1384 = vlaneseq
    %v1385 = vshrl.u32 %v1384, 7
    %v1386 = vsub.s32 %v1123, %v1385
    %v1387 = vrot.slane %v742, %v1386
    %v1388 = vsel %vm1128, %v1387, %v1383
    %v1389 = vlaneseq
    %v1390 = vshrl.u32 %v1389, 7
    %v1391 = vsub.s32 %v1130, %v1390
    %v1392 = vrot.slane %v745, %v1391
    %v1393 = vsel %vm1135, %v1392, %v1388
    %v1394 = vlaneseq
    %v1395 = vshrl.u32 %v1394, 7
    %v1396 = vsub.s32 %v1137, %v1395
    %v1397 = vrot.slane %v748, %v1396
    %v1398 = vsel %vm1142, %v1397, %v1393
    %v1399 = vlaneseq
    %v1400 = vshrl.u32 %v1399, 7
    %v1401 = vsub.s32 %v1144, %v1400
    %v1402 = vrot.slane %v751, %v1401
    %v1403 = vsel %vm1149, %v1402, %v1398
    %v1404 = vlaneseq
    %v1405 = vshrl.u32 %v1404, 7
    %v1406 = vsub.s32 %v1151, %v1405
    %v1407 = vrot.slane %v754, %v1406
    %v1408 = vsel %vm1156, %v1407, %v1403
    %v1409 = vlaneseq
    %v1410 = vshrl.u32 %v1409, 7
    %v1411 = vsub.s32 %v1158, %v1410
    %v1412 = vrot.slane %v757, %v1411
    %v1413 = vsel %vm1163, %v1412, %v1408
    %v1414 = vlaneseq
    %v1415 = vshrl.u32 %v1414, 7
    %v1416 = vsub.s32 %v1165, %v1415
    %v1417 = vrot.slane %v760, %v1416
    %v1418 = vsel %vm1170, %v1417, %v1413
    %v1419 = vlaneseq
    %v1420 = vshrl.u32 %v1419, 7
    %v1421 = vsub.s32 %v1172, %v1420
    %v1422 = vrot.slane %v763, %v1421
    %v1423 = vsel %vm1177, %v1422, %v1418
    %v1424 = vlaneseq
    %v1425 = vshrl.u32 %v1424, 7
    %v1426 = vsub.s32 %v1179, %v1425
    %v1427 = vrot.slane %v766, %v1426
    %v1428 = vsel %vm1184, %v1427, %v1423
    %v1429 = vlaneseq
    %v1430 = vshrl.u32 %v1429, 7
    %v1431 = vsub.s32 %v1186, %v1430
    %v1432 = vrot.slane %v769, %v1431
    %v1433 = vsel %vm1191, %v1432, %v1428
    %v1434 = vlaneseq
    %v1435 = vshrl.u32 %v1434, 7
    %v1436 = vsub.s32 %v1193, %v1435
    %v1437 = vrot.slane %v772, %v1436
    %v1438 = vsel %vm1198, %v1437, %v1433
    %v1439 = vlaneseq
    %v1440 = vshrl.u32 %v1439, 7
    %v1441 = vsub.s32 %v1200, %v1440
    %v1442 = vrot.slane %v775, %v1441
    %v1443 = vsel %vm1205, %v1442, %v1438
    %v1444 = vlaneseq
    %v1445 = vshrl.u32 %v1444, 7
    %v1446 = vsub.s32 %v1097, %v1445
    %v1447 = vrot.slane %v778, %v1446
    %v1448 = vlaneseq
    %v1449 = vshrl.u32 %v1448, 7
    %v1450 = vsub.s32 %v1102, %v1449
    %v1451 = vrot.slane %v781, %v1450
    %v1452 = vsel %vm1107, %v1451, %v1447
    %v1453 = vlaneseq
    %v1454 = vshrl.u32 %v1453, 7
    %v1455 = vsub.s32 %v1109, %v1454
    %v1456 = vrot.slane %v784, %v1455
    %v1457 = vsel %vm1114, %v1456, %v1452
    %v1458 = vlaneseq
    %v1459 = vshrl.u32 %v1458, 7
    %v1460 = vsub.s32 %v1116, %v1459
    %v1461 = vrot.slane %v787, %v1460
    %v1462 = vsel %vm1121, %v1461, %v1457
    %v1463 = vlaneseq
    %v1464 = vshrl.u32 %v1463, 7
    %v1465 = vsub.s32 %v1123, %v1464
    %v1466 = vrot.slane %v790, %v1465
    %v1467 = vsel %vm1128, %v1466, %v1462
    %v1468 = vlaneseq
    %v1469 = vshrl.u32 %v1468, 7
    %v1470 = vsub.s32 %v1130, %v1469
    %v1471 = vrot.slane %v793, %v1470
    %v1472 = vsel %vm1135, %v1471, %v1467
    %v1473 = vlaneseq
    %v1474 = vshrl.u32 %v1473, 7
    %v1475 = vsub.s32 %v1137, %v1474
    %v1476 = vrot.slane %v796, %v1475
    %v1477 = vsel %vm1142, %v1476, %v1472
    %v1478 = vlaneseq
    %v1479 = vshrl.u32 %v1478, 7
    %v1480 = vsub.s32 %v1144, %v1479
    %v1481 = vrot.slane %v799, %v1480
    %v1482 = vsel %vm1149, %v1481, %v1477
    %v1483 = vlaneseq
    %v1484 = vshrl.u32 %v1483, 7
    %v1485 = vsub.s32 %v1151, %v1484
    %v1486 = vrot.slane %v802, %v1485
    %v1487 = vsel %vm1156, %v1486, %v1482
    %v1488 = vlaneseq
    %v1489 = vshrl.u32 %v1488, 7
    %v1490 = vsub.s32 %v1158, %v1489
    %v1491 = vrot.slane %v805, %v1490
    %v1492 = vsel %vm1163, %v1491, %v1487
    %v1493 = vlaneseq
    %v1494 = vshrl.u32 %v1493, 7
    %v1495 = vsub.s32 %v1165, %v1494
    %v1496 = vrot.slane %v808, %v1495
    %v1497 = vsel %vm1170, %v1496, %v1492
    %v1498 = vlaneseq
    %v1499 = vshrl.u32 %v1498, 7
    %v1500 = vsub.s32 %v1172, %v1499
    %v1501 = vrot.slane %v811, %v1500
    %v1502 = vsel %vm1177, %v1501, %v1497
    %v1503 = vlaneseq
    %v1504 = vshrl.u32 %v1503, 7
    %v1505 = vsub.s32 %v1179, %v1504
    %v1506 = vrot.slane %v814, %v1505
    %v1507 = vsel %vm1184, %v1506, %v1502
    %v1508 = vlaneseq
    %v1509 = vshrl.u32 %v1508, 7
    %v1510 = vsub.s32 %v1186, %v1509
    %v1511 = vrot.slane %v817, %v1510
    %v1512 = vsel %vm1191, %v1511, %v1507
    %v1513 = vlaneseq
    %v1514 = vshrl.u32 %v1513, 7
    %v1515 = vsub.s32 %v1193, %v1514
    %v1516 = vrot.slane %v820, %v1515
    %v1517 = vsel %vm1198, %v1516, %v1512
    %v1518 = vlaneseq
    %v1519 = vshrl.u32 %v1518, 7
    %v1520 = vsub.s32 %v1200, %v1519
    %v1521 = vrot.slane %v823, %v1520
    %v1522 = vsel %vm1205, %v1521, %v1517
    %v1523 = vlaneseq
    %v1524 = vshrl.u32 %v1523, 7
    %v1525 = vsub.s32 %v1097, %v1524
    %v1526 = vrot.slane %v826, %v1525
    %v1527 = vlaneseq
    %v1528 = vshrl.u32 %v1527, 7
    %v1529 = vsub.s32 %v1102, %v1528
    %v1530 = vrot.slane %v829, %v1529
    %v1531 = vsel %vm1107, %v1530, %v1526
    %v1532 = vlaneseq
    %v1533 = vshrl.u32 %v1532, 7
    %v1534 = vsub.s32 %v1109, %v1533
    %v1535 = vrot.slane %v832, %v1534
    %v1536 = vsel %vm1114, %v1535, %v1531
    %v1537 = vlaneseq
    %v1538 = vshrl.u32 %v1537, 7
    %v1539 = vsub.s32 %v1116, %v1538
    %v1540 = vrot.slane %v835, %v1539
    %v1541 = vsel %vm1121, %v1540, %v1536
    %v1542 = vlaneseq
    %v1543 = vshrl.u32 %v1542, 7
    %v1544 = vsub.s32 %v1123, %v1543
    %v1545 = vrot.slane %v838, %v1544
    %v1546 = vsel %vm1128, %v1545, %v1541
    %v1547 = vlaneseq
    %v1548 = vshrl.u32 %v1547, 7
    %v1549 = vsub.s32 %v1130, %v1548
    %v1550 = vrot.slane %v841, %v1549
    %v1551 = vsel %vm1135, %v1550, %v1546
    %v1552 = vlaneseq
    %v1553 = vshrl.u32 %v1552, 7
    %v1554 = vsub.s32 %v1137, %v1553
    %v1555 = vrot.slane %v844, %v1554
    %v1556 = vsel %vm1142, %v1555, %v1551
    %v1557 = vlaneseq
    %v1558 = vshrl.u32 %v1557, 7
    %v1559 = vsub.s32 %v1144, %v1558
    %v1560 = vrot.slane %v847, %v1559
    %v1561 = vsel %vm1149, %v1560, %v1556
    %v1562 = vlaneseq
    %v1563 = vshrl.u32 %v1562, 7
    %v1564 = vsub.s32 %v1151, %v1563
    %v1565 = vrot.slane %v850, %v1564
    %v1566 = vsel %vm1156, %v1565, %v1561
    %v1567 = vlaneseq
    %v1568 = vshrl.u32 %v1567, 7
    %v1569 = vsub.s32 %v1158, %v1568
    %v1570 = vrot.slane %v853, %v1569
    %v1571 = vsel %vm1163, %v1570, %v1566
    %v1572 = vlaneseq
    %v1573 = vshrl.u32 %v1572, 7
    %v1574 = vsub.s32 %v1165, %v1573
    %v1575 = vrot.slane %v856, %v1574
    %v1576 = vsel %vm1170, %v1575, %v1571
    %v1577 = vlaneseq
    %v1578 = vshrl.u32 %v1577, 7
    %v1579 = vsub.s32 %v1172, %v1578
    %v1580 = vrot.slane %v859, %v1579
    %v1581 = vsel %vm1177, %v1580, %v1576
    %v1582 = vlaneseq
    %v1583 = vshrl.u32 %v1582, 7
    %v1584 = vsub.s32 %v1179, %v1583
    %v1585 = vrot.slane %v862, %v1584
    %v1586 = vsel %vm1184, %v1585, %v1581
    %v1587 = vlaneseq
    %v1588 = vshrl.u32 %v1587, 7
    %v1589 = vsub.s32 %v1186, %v1588
    %v1590 = vrot.slane %v865, %v1589
    %v1591 = vsel %vm1191, %v1590, %v1586
    %v1592 = vlaneseq
    %v1593 = vshrl.u32 %v1592, 7
    %v1594 = vsub.s32 %v1193, %v1593
    %v1595 = vrot.slane %v868, %v1594
    %v1596 = vsel %vm1198, %v1595, %v1591
    %v1597 = vlaneseq
    %v1598 = vshrl.u32 %v1597, 7
    %v1599 = vsub.s32 %v1200, %v1598
    %v1600 = vrot.slane %v871, %v1599
    %v1601 = vsel %vm1205, %v1600, %v1596
    %v1602 = vlaneseq
    %v1603 = vshrl.u32 %v1602, 7
    %v1604 = vsub.s32 %v1097, %v1603
    %v1605 = vrot.slane %v874, %v1604
    %v1606 = vlaneseq
    %v1607 = vshrl.u32 %v1606, 7
    %v1608 = vsub.s32 %v1102, %v1607
    %v1609 = vrot.slane %v877, %v1608
    %v1610 = vsel %vm1107, %v1609, %v1605
    %v1611 = vlaneseq
    %v1612 = vshrl.u32 %v1611, 7
    %v1613 = vsub.s32 %v1109, %v1612
    %v1614 = vrot.slane %v880, %v1613
    %v1615 = vsel %vm1114, %v1614, %v1610
    %v1616 = vlaneseq
    %v1617 = vshrl.u32 %v1616, 7
    %v1618 = vsub.s32 %v1116, %v1617
    %v1619 = vrot.slane %v883, %v1618
    %v1620 = vsel %vm1121, %v1619, %v1615
    %v1621 = vlaneseq
    %v1622 = vshrl.u32 %v1621, 7
    %v1623 = vsub.s32 %v1123, %v1622
    %v1624 = vrot.slane %v886, %v1623
    %v1625 = vsel %vm1128, %v1624, %v1620
    %v1626 = vlaneseq
    %v1627 = vshrl.u32 %v1626, 7
    %v1628 = vsub.s32 %v1130, %v1627
    %v1629 = vrot.slane %v889, %v1628
    %v1630 = vsel %vm1135, %v1629, %v1625
    %v1631 = vlaneseq
    %v1632 = vshrl.u32 %v1631, 7
    %v1633 = vsub.s32 %v1137, %v1632
    %v1634 = vrot.slane %v892, %v1633
    %v1635 = vsel %vm1142, %v1634, %v1630
    %v1636 = vlaneseq
    %v1637 = vshrl.u32 %v1636, 7
    %v1638 = vsub.s32 %v1144, %v1637
    %v1639 = vrot.slane %v895, %v1638
    %v1640 = vsel %vm1149, %v1639, %v1635
    %v1641 = vlaneseq
    %v1642 = vshrl.u32 %v1641, 7
    %v1643 = vsub.s32 %v1151, %v1642
    %v1644 = vrot.slane %v898, %v1643
    %v1645 = vsel %vm1156, %v1644, %v1640
    %v1646 = vlaneseq
    %v1647 = vshrl.u32 %v1646, 7
    %v1648 = vsub.s32 %v1158, %v1647
    %v1649 = vrot.slane %v901, %v1648
    %v1650 = vsel %vm1163, %v1649, %v1645
    %v1651 = vlaneseq
    %v1652 = vshrl.u32 %v1651, 7
    %v1653 = vsub.s32 %v1165, %v1652
    %v1654 = vrot.slane %v904, %v1653
    %v1655 = vsel %vm1170, %v1654, %v1650
    %v1656 = vlaneseq
    %v1657 = vshrl.u32 %v1656, 7
    %v1658 = vsub.s32 %v1172, %v1657
    %v1659 = vrot.slane %v907, %v1658
    %v1660 = vsel %vm1177, %v1659, %v1655
    %v1661 = vlaneseq
    %v1662 = vshrl.u32 %v1661, 7
    %v1663 = vsub.s32 %v1179, %v1662
    %v1664 = vrot.slane %v910, %v1663
    %v1665 = vsel %vm1184, %v1664, %v1660
    %v1666 = vlaneseq
    %v1667 = vshrl.u32 %v1666, 7
    %v1668 = vsub.s32 %v1186, %v1667
    %v1669 = vrot.slane %v913, %v1668
    %v1670 = vsel %vm1191, %v1669, %v1665
    %v1671 = vlaneseq
    %v1672 = vshrl.u32 %v1671, 7
    %v1673 = vsub.s32 %v1193, %v1672
    %v1674 = vrot.slane %v916, %v1673
    %v1675 = vsel %vm1198, %v1674, %v1670
    %v1676 = vlaneseq
    %v1677 = vshrl.u32 %v1676, 7
    %v1678 = vsub.s32 %v1200, %v1677
    %v1679 = vrot.slane %v919, %v1678
    %v1680 = vsel %vm1205, %v1679, %v1675
    %v1681 = vlaneseq
    %v1682 = vshrl.u32 %v1681, 7
    %v1683 = vsub.s32 %v1097, %v1682
    %v1684 = vrot.slane %v922, %v1683
    %v1685 = vlaneseq
    %v1686 = vshrl.u32 %v1685, 7
    %v1687 = vsub.s32 %v1102, %v1686
    %v1688 = vrot.slane %v925, %v1687
    %v1689 = vsel %vm1107, %v1688, %v1684
    %v1690 = vlaneseq
    %v1691 = vshrl.u32 %v1690, 7
    %v1692 = vsub.s32 %v1109, %v1691
    %v1693 = vrot.slane %v928, %v1692
    %v1694 = vsel %vm1114, %v1693, %v1689
    %v1695 = vlaneseq
    %v1696 = vshrl.u32 %v1695, 7
    %v1697 = vsub.s32 %v1116, %v1696
    %v1698 = vrot.slane %v931, %v1697
    %v1699 = vsel %vm1121, %v1698, %v1694
    %v1700 = vlaneseq
    %v1701 = vshrl.u32 %v1700, 7
    %v1702 = vsub.s32 %v1123, %v1701
    %v1703 = vrot.slane %v934, %v1702
    %v1704 = vsel %vm1128, %v1703, %v1699
    %v1705 = vlaneseq
    %v1706 = vshrl.u32 %v1705, 7
    %v1707 = vsub.s32 %v1130, %v1706
    %v1708 = vrot.slane %v937, %v1707
    %v1709 = vsel %vm1135, %v1708, %v1704
    %v1710 = vlaneseq
    %v1711 = vshrl.u32 %v1710, 7
    %v1712 = vsub.s32 %v1137, %v1711
    %v1713 = vrot.slane %v940, %v1712
    %v1714 = vsel %vm1142, %v1713, %v1709
    %v1715 = vlaneseq
    %v1716 = vshrl.u32 %v1715, 7
    %v1717 = vsub.s32 %v1144, %v1716
    %v1718 = vrot.slane %v943, %v1717
    %v1719 = vsel %vm1149, %v1718, %v1714
    %v1720 = vlaneseq
    %v1721 = vshrl.u32 %v1720, 7
    %v1722 = vsub.s32 %v1151, %v1721
    %v1723 = vrot.slane %v946, %v1722
    %v1724 = vsel %vm1156, %v1723, %v1719
    %v1725 = vlaneseq
    %v1726 = vshrl.u32 %v1725, 7
    %v1727 = vsub.s32 %v1158, %v1726
    %v1728 = vrot.slane %v949, %v1727
    %v1729 = vsel %vm1163, %v1728, %v1724
    %v1730 = vlaneseq
    %v1731 = vshrl.u32 %v1730, 7
    %v1732 = vsub.s32 %v1165, %v1731
    %v1733 = vrot.slane %v952, %v1732
    %v1734 = vsel %vm1170, %v1733, %v1729
    %v1735 = vlaneseq
    %v1736 = vshrl.u32 %v1735, 7
    %v1737 = vsub.s32 %v1172, %v1736
    %v1738 = vrot.slane %v955, %v1737
    %v1739 = vsel %vm1177, %v1738, %v1734
    %v1740 = vlaneseq
    %v1741 = vshrl.u32 %v1740, 7
    %v1742 = vsub.s32 %v1179, %v1741
    %v1743 = vrot.slane %v958, %v1742
    %v1744 = vsel %vm1184, %v1743, %v1739
    %v1745 = vlaneseq
    %v1746 = vshrl.u32 %v1745, 7
    %v1747 = vsub.s32 %v1186, %v1746
    %v1748 = vrot.slane %v961, %v1747
    %v1749 = vsel %vm1191, %v1748, %v1744
    %v1750 = vlaneseq
    %v1751 = vshrl.u32 %v1750, 7
    %v1752 = vsub.s32 %v1193, %v1751
    %v1753 = vrot.slane %v964, %v1752
    %v1754 = vsel %vm1198, %v1753, %v1749
    %v1755 = vlaneseq
    %v1756 = vshrl.u32 %v1755, 7
    %v1757 = vsub.s32 %v1200, %v1756
    %v1758 = vrot.slane %v967, %v1757
    %v1759 = vsel %vm1205, %v1758, %v1754
    %vm1760 = vcmask 1041409
    %v1761 = vsel %vm1760, %v1285, %v1206
    %vm1762 = vcmask 1042434
    %v1763 = vsel %vm1762, %v1364, %v1761
    %vm1764 = vcmask 1043459
    %v1765 = vsel %vm1764, %v1443, %v1763
    %vm1766 = vcmask 1044484
    %v1767 = vsel %vm1766, %v1522, %v1765
    %vm1768 = vcmask 1045509
    %v1769 = vsel %vm1768, %v1601, %v1767
    %vm1770 = vcmask 1046534
    %v1771 = vsel %vm1770, %v1680, %v1769
    %vm1772 = vcmask 1047559
    %v1773 = vsel %vm1772, %v1759, %v1771
    %1775 = vst [vmem:[#allocation7] sm:$0xff] %v1773
    // Predicated region
    $region18: #{tpu_custom_call.1} parent=1 // pred_check
      _
    $region19: #{tpu_custom_call.1} parent=1 // pred_check_branch
      %1777 = sbr.rel (0) target = $region21
    $region20: #{tpu_custom_call.1} parent=1 // pred_region
      %s1779 = ssub.s32 128, 128
      %1780 = vsyncadd [#allocation4], %s1779
      %s1782 = sshll.u32 [#allocation7], 4
      %s1783 = int_to_ptr.vmem [resolvable:$true] %s1782
      %1785 = dma.vmem_to_hbm [thread:$0]  %s1783, 128, %s2, [#allocation4]
    $region21: #{tpu_custom_call.1} parent=1 // pred_fallthru
      _
    // Predicated region
    $region22: #{tpu_custom_call.1} parent=1 // pred_check
      _
    $region23: #{tpu_custom_call.1} parent=1 // pred_check_branch
      %1787 = sbr.rel (0) target = $region25
    $region24: #{tpu_custom_call.1} parent=1 // pred_region
      %1788 = dma.done [#allocation4], 128
    $region25: #{tpu_custom_call.1} parent=1 // pred_fallthru
      _
    %1789 = vsyncpa [#allocation3], 1
    %1790 = vsyncpa [#allocation6], 1
    %1791 = vsyncpa [#allocation4], 1

</llo_original>
